<compile_context>
chip_gen: v7x
topology: tpu7x:2x2x1
jax: 0.10.0
libtpu: 0.0.40
codegen_flags: <defaults>
</compile_context>

<pallas_src>
import jax
import jax.numpy as jnp
from jax import lax
from jax.experimental import pallas as pl
from jax.experimental.pallas import tpu as pltpu

# logical (PyTorch) sizes
F_IN, H, H2, HID1, OUT = 2, 100, 200, 50, 10
NUM_INNER = 5
BN_EPS = 1e-5

# lane-padded sizes (multiples of the 128-lane vreg width; padding is zeros)
H_PAD, HID1_PAD, OUT_PAD = 128, 128, 128


def net_kernel(x0_ref, x1_ref, w_in0_ref, w_in1_ref, b_in_ref,
               w_b0g_ref, w_b0h_ref, b_b0_ref,
               w_l_ref, b_l_ref, gamma_ref, beta_ref,
               w_o1_ref, b_o1_ref, w_o2_ref, b_o2_ref, out_ref):
    f32, bf16 = jnp.float32, jnp.bfloat16
    GN = x0_ref.shape[0]
    G = out_ref.shape[0]
    N = GN // G

    # input_layer Linear(2, 100): K=2 contraction done as two VPU broadcast-FMAs
    # (avoids pushing a depth-2 matmul through the MXU).
    h = (x0_ref[...] * w_in0_ref[...]
         + x1_ref[...] * w_in1_ref[...]
         + b_in_ref[...])                                            # [GN, 128] f32

    # ---------------- block 0 (num_blocks = 1) ----------------
    # dgl.mean_nodes: sublane mean over the per-graph node axis.  At N == 8
    # (the sublane tile height) the [GN,128] <-> [G,N,128] reshape is
    # layout-free, so this is a pure XLU/VPU reduce — no one-hot matmul.
    gmean = jnp.mean(h.reshape(G, N, H_PAD), axis=1)                 # [G, 128] f32

    # Linear(200, 100) on cat([global rep, hidden rep]) as a split matmul.
    # The global-rep half (bias folded in) is computed on the G graph means and
    # broadcast back to the nodes — identical math, 1/N the MXU rows.
    yg = jnp.dot(gmean.astype(bf16), w_b0g_ref[...],
                 preferred_element_type=f32) + b_b0_ref[...]         # [G, 128]
    glob = jnp.broadcast_to(yg[:, None, :], (G, N, H_PAD)).reshape(GN, H_PAD)
    y = glob + jnp.dot(h.astype(bf16), w_b0h_ref[...],
                       preferred_element_type=f32)
    y = jnp.maximum(y, 0.0)                                          # ReLU

    # 5 x Sequential(ReLU, Linear(100, 100)).  The i=0 ReLU is a no-op right
    # after the ReLU above (idempotent), so it is folded away.  Weights are
    # consumed directly from the ref slice (no early hoist -> no vreg spills).
    for i in range(NUM_INNER):
        y = jnp.dot(y.astype(bf16), w_l_ref[i],
                    preferred_element_type=f32) + b_l_ref[i]
        if i + 1 < NUM_INNER:
            y = jnp.maximum(y, 0.0)

    # BatchNorm1d(100): module default is .training == True, so batch statistics
    # over all nodes (biased variance) are used; per-feature stats in f32, and
    # padded gamma/beta are exactly zero so padded lanes stay zero.
    mu = jnp.mean(y, axis=0, keepdims=True)
    d = y - mu
    var = jnp.mean(d * d, axis=0, keepdims=True)
    hbn = gamma_ref[...] * d * lax.rsqrt(var + BN_EPS) + beta_ref[...]

    # readout: dgl.mean_nodes -> Linear(100, 50) -> ReLU -> Linear(50, 10)
    g_mean = jnp.mean(hbn.reshape(G, N, H_PAD), axis=1)              # [G, 128]
    o = jnp.dot(g_mean.astype(bf16), w_o1_ref[...],
                preferred_element_type=f32) + b_o1_ref[...]
    o = jnp.maximum(o, 0.0)
    out_ref[...] = (jnp.dot(o.astype(bf16), w_o2_ref[...],
                            preferred_element_type=f32) + b_o2_ref[...])


def make_params(key):
    """Deterministic PyTorch-style (kaiming-uniform-ish) Linear init, weights [out, in]."""
    def lin(k, fan_in, fan_out):
        bound = 1.0 / float(fan_in) ** 0.5
        kw, kb = jax.random.split(k)
        w = jax.random.uniform(kw, (fan_out, fan_in), jnp.float32, -bound, bound)
        b = jax.random.uniform(kb, (fan_out,), jnp.float32, -bound, bound)
        return w, b

    keys = jax.random.split(key, 4 + NUM_INNER)
    w_in, b_in = lin(keys[0], F_IN, H)          # nn.Linear(2, 100)
    w_b0, b_b0 = lin(keys[1], H2, H)            # nn.Linear(200, 100)
    inner = [lin(keys[2 + i], H, H) for i in range(NUM_INNER)]   # 5 x nn.Linear(100, 100)
    w_o1, b_o1 = lin(keys[2 + NUM_INNER], H, HID1)               # nn.Linear(100, 50)
    w_o2, b_o2 = lin(keys[3 + NUM_INNER], HID1, OUT)             # nn.Linear(50, 10)
    return {
        "w_in": w_in, "b_in": b_in,
        "w_b0": w_b0, "b_b0": b_b0,
        "w_inner": [w for w, _ in inner], "b_inner": [b for _, b in inner],
        "bn_gamma": jnp.ones((H,), jnp.float32),   # nn.BatchNorm1d(100) affine init
        "bn_beta": jnp.zeros((H,), jnp.float32),
        "w_o1": w_o1, "b_o1": b_o1,
        "w_o2": w_o2, "b_o2": b_o2,
    }


def _pad2(a, rows, cols):
    return jnp.pad(a, ((0, rows - a.shape[0]), (0, cols - a.shape[1])))


def prepare_params(params):
    """One-time layout plumbing, hoisted out of the per-call forward:
    transpose PyTorch [out, in] weights to [in, out], pre-split the 200->100
    weight into its global/hidden halves, zero-pad every feature axis to the
    128-lane vreg width and cast MXU operands to bf16.  Zero padding of weight
    cols/rows, biases and gamma/beta keeps the logical math unchanged."""
    bf16 = jnp.bfloat16

    w_in_t = params["w_in"].T                                    # [2, 100]
    prep = {
        "w_in0": _pad2(w_in_t[0:1, :], 1, H_PAD),
        "w_in1": _pad2(w_in_t[1:2, :], 1, H_PAD),
        "b_in": _pad2(params["b_in"][None, :], 1, H_PAD),
    }

    w_b0_t = params["w_b0"].T                                    # [200, 100]
    prep["w_b0g"] = _pad2(w_b0_t[:H, :], H_PAD, H_PAD).astype(bf16)   # global-rep half
    prep["w_b0h"] = _pad2(w_b0_t[H:, :], H_PAD, H_PAD).astype(bf16)   # hidden-rep half
    prep["b_b0"] = _pad2(params["b_b0"][None, :], 1, H_PAD)

    prep["w_l"] = jnp.stack([_pad2(w.T, H_PAD, H_PAD)
                             for w in params["w_inner"]]).astype(bf16)  # [5, 128, 128]
    prep["b_l"] = jnp.stack([_pad2(b[None, :], 1, H_PAD)
                             for b in params["b_inner"]])               # [5, 1, 128]

    prep["gamma"] = _pad2(params["bn_gamma"][None, :], 1, H_PAD)
    prep["beta"] = _pad2(params["bn_beta"][None, :], 1, H_PAD)

    prep["w_o1"] = _pad2(params["w_o1"].T, H_PAD, HID1_PAD).astype(bf16)
    prep["b_o1"] = _pad2(params["b_o1"][None, :], 1, HID1_PAD)
    prep["w_o2"] = _pad2(params["w_o2"].T, HID1_PAD, OUT_PAD).astype(bf16)
    prep["b_o2"] = _pad2(params["b_o2"][None, :], 1, OUT_PAD)
    return prep


@jax.jit
def net_forward(x, prep):
    G, N, _ = x.shape
    GN = G * N

    # Only per-call plumbing left: flatten the node axis and split the two
    # input features (everything else is pre-padded/cast in prepare_params).
    xf = x.reshape(GN, F_IN)
    x0 = xf[:, 0:1]
    x1 = xf[:, 1:2]

    args = [x0, x1, prep["w_in0"], prep["w_in1"], prep["b_in"],
            prep["w_b0g"], prep["w_b0h"], prep["b_b0"],
            prep["w_l"], prep["b_l"], prep["gamma"], prep["beta"],
            prep["w_o1"], prep["b_o1"], prep["w_o2"], prep["b_o2"]]

    flops = 2 * (GN * (F_IN * H + H * H + NUM_INNER * H * H)
                 + G * (H * H + H * HID1 + HID1 * OUT))
    bytes_accessed = (sum(int(a.size) * a.dtype.itemsize for a in args)
                      + G * OUT_PAD * 4)

    vmem = lambda: pl.BlockSpec(memory_space=pltpu.MemorySpace.VMEM)
    out_padded = pl.pallas_call(
        net_kernel,
        out_shape=jax.ShapeDtypeStruct((G, OUT_PAD), jnp.float32),
        in_specs=[vmem() for _ in args],
        out_specs=vmem(),
        cost_estimate=pl.CostEstimate(flops=flops, transcendentals=H_PAD,
                                      bytes_accessed=bytes_accessed),
    )(*args)
    # TODO(synk): for large G*N, add a node-tile row grid with
    # dimension_semantics=("parallel",) (v7x megacore), constant-index weight
    # BlockSpecs to keep weights VMEM-resident, and a two-pass BN stats scheme;
    # at G=2, N=8 the kernel is launch-bound and gridding only adds overhead.
    return out_padded[:, :OUT]


if __name__ == "__main__":
    key = jax.random.PRNGKey(0)
    pkey, xkey = jax.random.split(key)
    params = make_params(pkey)
    prep = prepare_params(params)    # one-time weight padding/casting, off the hot path

    G, N = 2, 8                      # 2 graphs, 8 nodes each; g.ndata['xy'] -> [G, N, 2]
    x = jax.random.normal(xkey, (G, N, F_IN), jnp.float32)

    out = net_forward(x, prep)
    jax.block_until_ready(out)
    assert out.shape == (G, OUT) and out.dtype == jnp.float32
    # TODO(synk): ragged DGL batches (variable nodes per graph) would need segment ids /
    # scalar-prefetched offsets; fixed-N dense batching is used here.
    print("KERNEL_OK")
</pallas_src>

<mosaic_0001>
module attributes {stable_mosaic.version = 11 : i64} {
  func.func @net_kernel(%arg0: memref<16x1xf32, #tpu.memory_space<vmem>>, %arg1: memref<16x1xf32, #tpu.memory_space<vmem>>, %arg2: memref<1x128xf32, #tpu.memory_space<vmem>>, %arg3: memref<1x128xf32, #tpu.memory_space<vmem>>, %arg4: memref<1x128xf32, #tpu.memory_space<vmem>>, %arg5: memref<128x128xbf16, #tpu.memory_space<vmem>>, %arg6: memref<128x128xbf16, #tpu.memory_space<vmem>>, %arg7: memref<1x128xf32, #tpu.memory_space<vmem>>, %arg8: memref<5x128x128xbf16, #tpu.memory_space<vmem>>, %arg9: memref<5x1x128xf32, #tpu.memory_space<vmem>>, %arg10: memref<1x128xf32, #tpu.memory_space<vmem>>, %arg11: memref<1x128xf32, #tpu.memory_space<vmem>>, %arg12: memref<128x128xbf16, #tpu.memory_space<vmem>>, %arg13: memref<1x128xf32, #tpu.memory_space<vmem>>, %arg14: memref<128x128xbf16, #tpu.memory_space<vmem>>, %arg15: memref<1x128xf32, #tpu.memory_space<vmem>>, %arg16: memref<2x128xf32, #tpu.memory_space<vmem>>) attributes {dimension_semantics = [], scalar_prefetch = 0 : i64, scratch_operands = 0 : i64, tpu.core_type = #tpu.core_type<tc>} {
    %c0 = arith.constant 0 : index
    %c0_0 = arith.constant 0 : index
    %0 = vector.load %arg0[%c0, %c0_0] : memref<16x1xf32, #tpu.memory_space<vmem>>, vector<16x1xf32>
    %c0_1 = arith.constant 0 : index
    %c0_2 = arith.constant 0 : index
    %1 = vector.load %arg2[%c0_1, %c0_2] : memref<1x128xf32, #tpu.memory_space<vmem>>, vector<1x128xf32>
    %2 = vector.broadcast %0 : vector<16x1xf32> to vector<16x128xf32>
    %3 = vector.broadcast %1 : vector<1x128xf32> to vector<16x128xf32>
    %4 = arith.mulf %2, %3 : vector<16x128xf32>
    %c0_3 = arith.constant 0 : index
    %c0_4 = arith.constant 0 : index
    %5 = vector.load %arg1[%c0_3, %c0_4] : memref<16x1xf32, #tpu.memory_space<vmem>>, vector<16x1xf32>
    %c0_5 = arith.constant 0 : index
    %c0_6 = arith.constant 0 : index
    %6 = vector.load %arg3[%c0_5, %c0_6] : memref<1x128xf32, #tpu.memory_space<vmem>>, vector<1x128xf32>
    %7 = vector.broadcast %5 : vector<16x1xf32> to vector<16x128xf32>
    %8 = vector.broadcast %6 : vector<1x128xf32> to vector<16x128xf32>
    %9 = arith.mulf %7, %8 : vector<16x128xf32>
    %10 = arith.addf %4, %9 : vector<16x128xf32>
    %c0_7 = arith.constant 0 : index
    %c0_8 = arith.constant 0 : index
    %11 = vector.load %arg4[%c0_7, %c0_8] : memref<1x128xf32, #tpu.memory_space<vmem>>, vector<1x128xf32>
    %12 = vector.broadcast %11 : vector<1x128xf32> to vector<16x128xf32>
    %13 = arith.addf %10, %12 : vector<16x128xf32>
    %14 = vector.shape_cast %13 : vector<16x128xf32> to vector<2x8x128xf32>
    %cst = arith.constant dense<0.000000e+00> : vector<2x128xf32>
    %15 = vector.multi_reduction <add>, %14, %cst [1] : vector<2x8x128xf32> to vector<2x128xf32>
    %cst_9 = arith.constant 8.000000e+00 : f32
    %16 = vector.broadcast %cst_9 : f32 to vector<2x128xf32>
    %17 = arith.divf %15, %16 : vector<2x128xf32>
    %18 = arith.truncf %17 : vector<2x128xf32> to vector<2x128xbf16>
    %c0_10 = arith.constant 0 : index
    %c0_11 = arith.constant 0 : index
    %19 = vector.load %arg5[%c0_10, %c0_11] : memref<128x128xbf16, #tpu.memory_space<vmem>>, vector<128x128xbf16>
    %cst_12 = arith.constant dense<0.000000e+00> : vector<2x128xf32>
    %20 = tpu.matmul %18, %19, %cst_12 {dimension_numbers = #tpu.dot_dimension_numbers<[1], [0], [0], [1], [0, 0, 1, 1], [], []>} : vector<2x128xbf16>, vector<128x128xbf16>, vector<2x128xf32> -> vector<2x128xf32>
    %c0_13 = arith.constant 0 : index
    %c0_14 = arith.constant 0 : index
    %21 = vector.load %arg7[%c0_13, %c0_14] : memref<1x128xf32, #tpu.memory_space<vmem>>, vector<1x128xf32>
    %22 = vector.broadcast %21 : vector<1x128xf32> to vector<2x128xf32>
    %23 = arith.addf %20, %22 : vector<2x128xf32>
    %24 = vector.shape_cast %23 : vector<2x128xf32> to vector<2x1x128xf32>
    %25 = vector.shape_cast %24 : vector<2x1x128xf32> to vector<2x1x128xf32>
    %26 = vector.broadcast %25 : vector<2x1x128xf32> to vector<2x8x128xf32>
    %27 = vector.shape_cast %26 : vector<2x8x128xf32> to vector<16x128xf32>
    %28 = arith.truncf %13 : vector<16x128xf32> to vector<16x128xbf16>
    %c0_15 = arith.constant 0 : index
    %c0_16 = arith.constant 0 : index
    %29 = vector.load %arg6[%c0_15, %c0_16] : memref<128x128xbf16, #tpu.memory_space<vmem>>, vector<128x128xbf16>
    %cst_17 = arith.constant dense<0.000000e+00> : vector<16x128xf32>
    %30 = tpu.matmul %28, %29, %cst_17 {dimension_numbers = #tpu.dot_dimension_numbers<[1], [0], [0], [1], [0, 0, 1, 1], [], []>} : vector<16x128xbf16>, vector<128x128xbf16>, vector<16x128xf32> -> vector<16x128xf32>
    %31 = arith.addf %27, %30 : vector<16x128xf32>
    %cst_18 = arith.constant 0.000000e+00 : f32
    %32 = vector.broadcast %cst_18 : f32 to vector<16x128xf32>
    %33 = arith.maximumf %31, %32 : vector<16x128xf32>
    %34 = arith.truncf %33 : vector<16x128xf32> to vector<16x128xbf16>
    %c0_19 = arith.constant 0 : index
    %c0_20 = arith.constant 0 : index
    %c0_21 = arith.constant 0 : index
    %35 = vector.load %arg8[%c0_19, %c0_20, %c0_21] : memref<5x128x128xbf16, #tpu.memory_space<vmem>>, vector<1x128x128xbf16>
    %36 = vector.shape_cast %35 : vector<1x128x128xbf16> to vector<128x128xbf16>
    %cst_22 = arith.constant dense<0.000000e+00> : vector<16x128xf32>
    %37 = tpu.matmul %34, %36, %cst_22 {dimension_numbers = #tpu.dot_dimension_numbers<[1], [0], [0], [1], [0, 0, 1, 1], [], []>} : vector<16x128xbf16>, vector<128x128xbf16>, vector<16x128xf32> -> vector<16x128xf32>
    %c0_23 = arith.constant 0 : index
    %c0_24 = arith.constant 0 : index
    %c0_25 = arith.constant 0 : index
    %38 = vector.load %arg9[%c0_23, %c0_24, %c0_25] : memref<5x1x128xf32, #tpu.memory_space<vmem>>, vector<1x1x128xf32>
    %39 = vector.shape_cast %38 : vector<1x1x128xf32> to vector<1x128xf32>
    %40 = vector.broadcast %39 : vector<1x128xf32> to vector<16x128xf32>
    %41 = arith.addf %37, %40 : vector<16x128xf32>
    %cst_26 = arith.constant 0.000000e+00 : f32
    %42 = vector.broadcast %cst_26 : f32 to vector<16x128xf32>
    %43 = arith.maximumf %41, %42 : vector<16x128xf32>
    %44 = arith.truncf %43 : vector<16x128xf32> to vector<16x128xbf16>
    %c1 = arith.constant 1 : index
    %c0_27 = arith.constant 0 : index
    %c0_28 = arith.constant 0 : index
    %45 = vector.load %arg8[%c1, %c0_27, %c0_28] : memref<5x128x128xbf16, #tpu.memory_space<vmem>>, vector<1x128x128xbf16>
    %46 = vector.shape_cast %45 : vector<1x128x128xbf16> to vector<128x128xbf16>
    %cst_29 = arith.constant dense<0.000000e+00> : vector<16x128xf32>
    %47 = tpu.matmul %44, %46, %cst_29 {dimension_numbers = #tpu.dot_dimension_numbers<[1], [0], [0], [1], [0, 0, 1, 1], [], []>} : vector<16x128xbf16>, vector<128x128xbf16>, vector<16x128xf32> -> vector<16x128xf32>
    %c1_30 = arith.constant 1 : index
    %c0_31 = arith.constant 0 : index
    %c0_32 = arith.constant 0 : index
    %48 = vector.load %arg9[%c1_30, %c0_31, %c0_32] : memref<5x1x128xf32, #tpu.memory_space<vmem>>, vector<1x1x128xf32>
    %49 = vector.shape_cast %48 : vector<1x1x128xf32> to vector<1x128xf32>
    %50 = vector.broadcast %49 : vector<1x128xf32> to vector<16x128xf32>
    %51 = arith.addf %47, %50 : vector<16x128xf32>
    %cst_33 = arith.constant 0.000000e+00 : f32
    %52 = vector.broadcast %cst_33 : f32 to vector<16x128xf32>
    %53 = arith.maximumf %51, %52 : vector<16x128xf32>
    %54 = arith.truncf %53 : vector<16x128xf32> to vector<16x128xbf16>
    %c2 = arith.constant 2 : index
    %c0_34 = arith.constant 0 : index
    %c0_35 = arith.constant 0 : index
    %55 = vector.load %arg8[%c2, %c0_34, %c0_35] : memref<5x128x128xbf16, #tpu.memory_space<vmem>>, vector<1x128x128xbf16>
    %56 = vector.shape_cast %55 : vector<1x128x128xbf16> to vector<128x128xbf16>
    %cst_36 = arith.constant dense<0.000000e+00> : vector<16x128xf32>
    %57 = tpu.matmul %54, %56, %cst_36 {dimension_numbers = #tpu.dot_dimension_numbers<[1], [0], [0], [1], [0, 0, 1, 1], [], []>} : vector<16x128xbf16>, vector<128x128xbf16>, vector<16x128xf32> -> vector<16x128xf32>
    %c2_37 = arith.constant 2 : index
    %c0_38 = arith.constant 0 : index
    %c0_39 = arith.constant 0 : index
    %58 = vector.load %arg9[%c2_37, %c0_38, %c0_39] : memref<5x1x128xf32, #tpu.memory_space<vmem>>, vector<1x1x128xf32>
    %59 = vector.shape_cast %58 : vector<1x1x128xf32> to vector<1x128xf32>
    %60 = vector.broadcast %59 : vector<1x128xf32> to vector<16x128xf32>
    %61 = arith.addf %57, %60 : vector<16x128xf32>
    %cst_40 = arith.constant 0.000000e+00 : f32
    %62 = vector.broadcast %cst_40 : f32 to vector<16x128xf32>
    %63 = arith.maximumf %61, %62 : vector<16x128xf32>
    %64 = arith.truncf %63 : vector<16x128xf32> to vector<16x128xbf16>
    %c3 = arith.constant 3 : index
    %c0_41 = arith.constant 0 : index
    %c0_42 = arith.constant 0 : index
    %65 = vector.load %arg8[%c3, %c0_41, %c0_42] : memref<5x128x128xbf16, #tpu.memory_space<vmem>>, vector<1x128x128xbf16>
    %66 = vector.shape_cast %65 : vector<1x128x128xbf16> to vector<128x128xbf16>
    %cst_43 = arith.constant dense<0.000000e+00> : vector<16x128xf32>
    %67 = tpu.matmul %64, %66, %cst_43 {dimension_numbers = #tpu.dot_dimension_numbers<[1], [0], [0], [1], [0, 0, 1, 1], [], []>} : vector<16x128xbf16>, vector<128x128xbf16>, vector<16x128xf32> -> vector<16x128xf32>
    %c3_44 = arith.constant 3 : index
    %c0_45 = arith.constant 0 : index
    %c0_46 = arith.constant 0 : index
    %68 = vector.load %arg9[%c3_44, %c0_45, %c0_46] : memref<5x1x128xf32, #tpu.memory_space<vmem>>, vector<1x1x128xf32>
    %69 = vector.shape_cast %68 : vector<1x1x128xf32> to vector<1x128xf32>
    %70 = vector.broadcast %69 : vector<1x128xf32> to vector<16x128xf32>
    %71 = arith.addf %67, %70 : vector<16x128xf32>
    %cst_47 = arith.constant 0.000000e+00 : f32
    %72 = vector.broadcast %cst_47 : f32 to vector<16x128xf32>
    %73 = arith.maximumf %71, %72 : vector<16x128xf32>
    %74 = arith.truncf %73 : vector<16x128xf32> to vector<16x128xbf16>
    %c4 = arith.constant 4 : index
    %c0_48 = arith.constant 0 : index
    %c0_49 = arith.constant 0 : index
    %75 = vector.load %arg8[%c4, %c0_48, %c0_49] : memref<5x128x128xbf16, #tpu.memory_space<vmem>>, vector<1x128x128xbf16>
    %76 = vector.shape_cast %75 : vector<1x128x128xbf16> to vector<128x128xbf16>
    %cst_50 = arith.constant dense<0.000000e+00> : vector<16x128xf32>
    %77 = tpu.matmul %74, %76, %cst_50 {dimension_numbers = #tpu.dot_dimension_numbers<[1], [0], [0], [1], [0, 0, 1, 1], [], []>} : vector<16x128xbf16>, vector<128x128xbf16>, vector<16x128xf32> -> vector<16x128xf32>
    %c4_51 = arith.constant 4 : index
    %c0_52 = arith.constant 0 : index
    %c0_53 = arith.constant 0 : index
    %78 = vector.load %arg9[%c4_51, %c0_52, %c0_53] : memref<5x1x128xf32, #tpu.memory_space<vmem>>, vector<1x1x128xf32>
    %79 = vector.shape_cast %78 : vector<1x1x128xf32> to vector<1x128xf32>
    %80 = vector.broadcast %79 : vector<1x128xf32> to vector<16x128xf32>
    %81 = arith.addf %77, %80 : vector<16x128xf32>
    %cst_54 = arith.constant dense<0.000000e+00> : vector<128xf32>
    %82 = vector.multi_reduction <add>, %81, %cst_54 [0] : vector<16x128xf32> to vector<128xf32>
    %83 = vector.shape_cast %82 : vector<128xf32> to vector<1x128xf32>
    %cst_55 = arith.constant 1.600000e+01 : f32
    %84 = vector.broadcast %cst_55 : f32 to vector<1x128xf32>
    %85 = arith.divf %83, %84 : vector<1x128xf32>
    %86 = vector.broadcast %85 : vector<1x128xf32> to vector<16x128xf32>
    %87 = arith.subf %81, %86 : vector<16x128xf32>
    %88 = arith.mulf %87, %87 : vector<16x128xf32>
    %cst_56 = arith.constant dense<0.000000e+00> : vector<128xf32>
    %89 = vector.multi_reduction <add>, %88, %cst_56 [0] : vector<16x128xf32> to vector<128xf32>
    %90 = vector.shape_cast %89 : vector<128xf32> to vector<1x128xf32>
    %cst_57 = arith.constant 1.600000e+01 : f32
    %91 = vector.broadcast %cst_57 : f32 to vector<1x128xf32>
    %92 = arith.divf %90, %91 : vector<1x128xf32>
    %c0_58 = arith.constant 0 : index
    %c0_59 = arith.constant 0 : index
    %93 = vector.load %arg10[%c0_58, %c0_59] : memref<1x128xf32, #tpu.memory_space<vmem>>, vector<1x128xf32>
    %94 = vector.broadcast %93 : vector<1x128xf32> to vector<16x128xf32>
    %95 = arith.mulf %94, %87 : vector<16x128xf32>
    %cst_60 = arith.constant 9.99999974E-6 : f32
    %96 = vector.broadcast %cst_60 : f32 to vector<1x128xf32>
    %97 = arith.addf %92, %96 : vector<1x128xf32>
    %98 = math.rsqrt %97 : vector<1x128xf32>
    %99 = vector.broadcast %98 : vector<1x128xf32> to vector<16x128xf32>
    %100 = arith.mulf %95, %99 : vector<16x128xf32>
    %c0_61 = arith.constant 0 : index
    %c0_62 = arith.constant 0 : index
    %101 = vector.load %arg11[%c0_61, %c0_62] : memref<1x128xf32, #tpu.memory_space<vmem>>, vector<1x128xf32>
    %102 = vector.broadcast %101 : vector<1x128xf32> to vector<16x128xf32>
    %103 = arith.addf %100, %102 : vector<16x128xf32>
    %104 = vector.shape_cast %103 : vector<16x128xf32> to vector<2x8x128xf32>
    %cst_63 = arith.constant dense<0.000000e+00> : vector<2x128xf32>
    %105 = vector.multi_reduction <add>, %104, %cst_63 [1] : vector<2x8x128xf32> to vector<2x128xf32>
    %cst_64 = arith.constant 8.000000e+00 : f32
    %106 = vector.broadcast %cst_64 : f32 to vector<2x128xf32>
    %107 = arith.divf %105, %106 : vector<2x128xf32>
    %108 = arith.truncf %107 : vector<2x128xf32> to vector<2x128xbf16>
    %c0_65 = arith.constant 0 : index
    %c0_66 = arith.constant 0 : index
    %109 = vector.load %arg12[%c0_65, %c0_66] : memref<128x128xbf16, #tpu.memory_space<vmem>>, vector<128x128xbf16>
    %cst_67 = arith.constant dense<0.000000e+00> : vector<2x128xf32>
    %110 = tpu.matmul %108, %109, %cst_67 {dimension_numbers = #tpu.dot_dimension_numbers<[1], [0], [0], [1], [0, 0, 1, 1], [], []>} : vector<2x128xbf16>, vector<128x128xbf16>, vector<2x128xf32> -> vector<2x128xf32>
    %c0_68 = arith.constant 0 : index
    %c0_69 = arith.constant 0 : index
    %111 = vector.load %arg13[%c0_68, %c0_69] : memref<1x128xf32, #tpu.memory_space<vmem>>, vector<1x128xf32>
    %112 = vector.broadcast %111 : vector<1x128xf32> to vector<2x128xf32>
    %113 = arith.addf %110, %112 : vector<2x128xf32>
    %cst_70 = arith.constant 0.000000e+00 : f32
    %114 = vector.broadcast %cst_70 : f32 to vector<2x128xf32>
    %115 = arith.maximumf %113, %114 : vector<2x128xf32>
    %116 = arith.truncf %115 : vector<2x128xf32> to vector<2x128xbf16>
    %c0_71 = arith.constant 0 : index
    %c0_72 = arith.constant 0 : index
    %117 = vector.load %arg14[%c0_71, %c0_72] : memref<128x128xbf16, #tpu.memory_space<vmem>>, vector<128x128xbf16>
    %cst_73 = arith.constant dense<0.000000e+00> : vector<2x128xf32>
    %118 = tpu.matmul %116, %117, %cst_73 {dimension_numbers = #tpu.dot_dimension_numbers<[1], [0], [0], [1], [0, 0, 1, 1], [], []>} : vector<2x128xbf16>, vector<128x128xbf16>, vector<2x128xf32> -> vector<2x128xf32>
    %c0_74 = arith.constant 0 : index
    %c0_75 = arith.constant 0 : index
    %119 = vector.load %arg15[%c0_74, %c0_75] : memref<1x128xf32, #tpu.memory_space<vmem>>, vector<1x128xf32>
    %120 = vector.broadcast %119 : vector<1x128xf32> to vector<2x128xf32>
    %121 = arith.addf %118, %120 : vector<2x128xf32>
    %c0_76 = arith.constant 0 : index
    %c0_77 = arith.constant 0 : index
    %122 = vector.load %arg16[%c0_76, %c0_77] : memref<2x128xf32, #tpu.memory_space<vmem>>, vector<2x128xf32>
    tpu.vector_store %arg16[%c0_76, %c0_77], %121 {strides = array<i32>} : memref<2x128xf32, #tpu.memory_space<vmem>>, vector<2x128xf32>,
    return
  }
}

</mosaic_0001>

<llo_original>
// kernel: net_forward.1
$region0: #{net_forward.1}
  #allocation0 [shape = 'u32[]', space=smem, size = 0x4, offset = 0x4, fixed_abs, tag = 'smem constant byte address 0x4 - core index']
  #allocation1 [shape = 'u32[144,128]{1,0:T(1,128)}', space=vmem, size = 0x12000, scoped, tag = 'internal scratch']
  %s0 = inlined_call_operand.vmem [shape: f32[16,1], index: 0, kind: input, shape index: {}]
  %s1 = inlined_call_operand.vmem [shape: f32[16,1], index: 1, kind: input, shape index: {}]
  %s2 = inlined_call_operand.vmem [shape: f32[1,128], index: 2, kind: input, shape index: {}]
  %s3 = inlined_call_operand.vmem [shape: f32[1,128], index: 3, kind: input, shape index: {}]
  %s4 = inlined_call_operand.hbm [shape: f32[1,128], index: 4, kind: input, shape index: {}]
  %s5 = inlined_call_operand.vmem [shape: bf16[128,128], index: 5, kind: input, shape index: {}]
  %s6 = inlined_call_operand.vmem [shape: bf16[128,128], index: 6, kind: input, shape index: {}]
  %s7 = inlined_call_operand.hbm [shape: f32[1,128], index: 7, kind: input, shape index: {}]
  %s8 = inlined_call_operand.hbm [shape: bf16[5,128,128], index: 8, kind: input, shape index: {}]
  %s9 = inlined_call_operand.hbm [shape: f32[5,1,128], index: 9, kind: input, shape index: {}]
  %s10 = inlined_call_operand.hbm [shape: f32[1,128], index: 10, kind: input, shape index: {}]
  %s11 = inlined_call_operand.hbm [shape: f32[1,128], index: 11, kind: input, shape index: {}]
  %s12 = inlined_call_operand.hbm [shape: bf16[128,128], index: 12, kind: input, shape index: {}]
  %s13 = inlined_call_operand.hbm [shape: f32[1,128], index: 13, kind: input, shape index: {}]
  %s14 = inlined_call_operand.hbm [shape: bf16[128,128], index: 14, kind: input, shape index: {}]
  %s15 = inlined_call_operand.hbm [shape: f32[1,128], index: 15, kind: input, shape index: {}]
  %s16 = inlined_call_operand.hbm [shape: f32[2,128], index: 16, kind: output, shape index: {}]
  %s17 = sld [smem:[#allocation0]]
  $region114: #{net_forward.1} parent=0
    _
  %s19 = ssub.s32 1, %s17
  %s20 = scalar_select 0, %s19, %s17
  $region1: #{net_forward.1} parent=0
    #allocation2 [shape = 'u8[512]{0}', space=vmem, size = 0x400, scoped, tag = 'input window, operand 4, single buffered']
    #allocation3 [shape = 's32[1]{0}', space=sflag, size = 0x4, scoped, tag = 'scoped memory for net_forward.1']
    #allocation4 [shape = 's32[1]{0}', space=sflag, size = 0x4, scoped, tag = 'scoped memory for net_forward.1']
    #allocation5 [shape = 'u8[512]{0}', space=vmem, size = 0x400, scoped, tag = 'input window, operand 7, single buffered']
    #allocation6 [shape = 's32[1]{0}', space=sflag, size = 0x4, scoped, tag = 'scoped memory for net_forward.1']
    #allocation7 [shape = 'u8[163840]{0}', space=vmem, size = 0x28000, scoped, tag = 'input window, operand 8, single buffered']
    #allocation8 [shape = 'u8[2560]{0}', space=vmem, size = 0xc00, scoped, tag = 'input window, operand 9, single buffered']
    #allocation9 [shape = 's32[1]{0}', space=sflag, size = 0x4, scoped, tag = 'scoped memory for net_forward.1']
    #allocation10 [shape = 'u8[512]{0}', space=vmem, size = 0x400, scoped, tag = 'input window, operand 10, single buffered']
    #allocation11 [shape = 'u8[512]{0}', space=vmem, size = 0x400, scoped, tag = 'input window, operand 11, single buffered']
    #allocation12 [shape = 's32[1]{0}', space=sflag, size = 0x4, scoped, tag = 'scoped memory for net_forward.1']
    #allocation13 [shape = 'u8[32768]{0}', space=vmem, size = 0x8000, scoped, tag = 'input window, operand 12, single buffered']
    #allocation14 [shape = 'u8[512]{0}', space=vmem, size = 0x400, scoped, tag = 'input window, operand 13, single buffered']
    #allocation15 [shape = 's32[1]{0}', space=sflag, size = 0x4, scoped, tag = 'scoped memory for net_forward.1']
    #allocation16 [shape = 'u8[32768]{0}', space=vmem, size = 0x8000, scoped, tag = 'input window, operand 14, single buffered']
    #allocation17 [shape = 'u8[512]{0}', space=vmem, size = 0x400, scoped, tag = 'input window, operand 15, single buffered']
    #allocation18 [shape = 's32[1]{0}', space=sflag, size = 0x4, scoped, tag = 'scoped memory for net_forward.1']
    #allocation19 [shape = 'u8[1024]{0}', space=vmem, size = 0x400, scoped, tag = 'output window, operand 0, single buffered']
    %21 = vsyncpa [#allocation3], 0
    %22 = vsyncpa [#allocation6], 0
    %23 = vsyncpa [#allocation9], 0
    %24 = vsyncpa [#allocation12], 0
    %25 = vsyncpa [#allocation15], 0
    %26 = vsyncpa [#allocation18], 0
    %27 = vsyncpa [#allocation4], 0
    // Predicated region
    $region2: #{net_forward.1} parent=1 // pred_check
      _
    $region3: #{net_forward.1} parent=1 // pred_check_branch
      %29 = sbr.rel (0) target = $region5
    $region4: #{net_forward.1} parent=1 // pred_region
      _
    $region5: #{net_forward.1} parent=1 // pred_fallthru
      _
    // Predicated region
    $region6: #{net_forward.1} parent=1 // pred_check
      _
    $region7: #{net_forward.1} parent=1 // pred_check_branch
      %31 = sbr.rel (0) target = $region9
    $region8: #{net_forward.1} parent=1 // pred_region
      _
    $region9: #{net_forward.1} parent=1 // pred_fallthru
      _
    // Predicated region
    $region10: #{net_forward.1} parent=1 // pred_check
      _
    $region11: #{net_forward.1} parent=1 // pred_check_branch
      %33 = sbr.rel (0) target = $region13
    $region12: #{net_forward.1} parent=1 // pred_region
      _
    $region13: #{net_forward.1} parent=1 // pred_fallthru
      _
    // Predicated region
    $region14: #{net_forward.1} parent=1 // pred_check
      _
    $region15: #{net_forward.1} parent=1 // pred_check_branch
      %35 = sbr.rel (0) target = $region17
    $region16: #{net_forward.1} parent=1 // pred_region
      _
    $region17: #{net_forward.1} parent=1 // pred_fallthru
      _
    // Predicated region
    $region18: #{net_forward.1} parent=1 // pred_check
      _
    $region19: #{net_forward.1} parent=1 // pred_check_branch
      %37 = sbr.rel (0) target = $region21
    $region20: #{net_forward.1} parent=1 // pred_region
      %s39 = ssub.s32 16, 16
      %40 = vsyncadd [#allocation3], %s39
      %s42 = sshll.u32 [#allocation2], 4
      %s43 = int_to_ptr.vmem [resolvable:$true] %s42
      %45 = dma.hbm_to_vmem [thread:$0]  %s4, 16, %s43, [#allocation3]
    $region21: #{net_forward.1} parent=1 // pred_fallthru
      _
    // Predicated region
    $region22: #{net_forward.1} parent=1 // pred_check
      _
    $region23: #{net_forward.1} parent=1 // pred_check_branch
      %47 = sbr.rel (0) target = $region25
    $region24: #{net_forward.1} parent=1 // pred_region
      _
    $region25: #{net_forward.1} parent=1 // pred_fallthru
      _
    // Predicated region
    $region26: #{net_forward.1} parent=1 // pred_check
      _
    $region27: #{net_forward.1} parent=1 // pred_check_branch
      %49 = sbr.rel (0) target = $region29
    $region28: #{net_forward.1} parent=1 // pred_region
      _
    $region29: #{net_forward.1} parent=1 // pred_fallthru
      _
    // Predicated region
    $region30: #{net_forward.1} parent=1 // pred_check
      _
    $region31: #{net_forward.1} parent=1 // pred_check_branch
      %51 = sbr.rel (0) target = $region33
    $region32: #{net_forward.1} parent=1 // pred_region
      %s53 = ssub.s32 16, 16
      %54 = vsyncadd [#allocation6], %s53
      %s56 = sshll.u32 [#allocation5], 4
      %s57 = int_to_ptr.vmem [resolvable:$true] %s56
      %59 = dma.hbm_to_vmem [thread:$0]  %s7, 16, %s57, [#allocation6]
    $region33: #{net_forward.1} parent=1 // pred_fallthru
      _
    // Predicated region
    $region34: #{net_forward.1} parent=1 // pred_check
      _
    $region35: #{net_forward.1} parent=1 // pred_check_branch
      %61 = sbr.rel (0) target = $region37
    $region36: #{net_forward.1} parent=1 // pred_region
      %s63 = ssub.s32 5120, 5120
      %64 = vsyncadd [#allocation6], %s63
      %s65 = sshll.u32 [#allocation7], 4
      %s66 = int_to_ptr.vmem [resolvable:$true] %s65
      %71 = dma.hbm_to_vmem [thread:$0]  %s8, 5120, %s66, [#allocation6], 64, 64, 4
    $region37: #{net_forward.1} parent=1 // pred_fallthru
      _
    // Predicated region
    $region38: #{net_forward.1} parent=1 // pred_check
      _
    $region39: #{net_forward.1} parent=1 // pred_check_branch
      %73 = sbr.rel (0) target = $region41
    $region40: #{net_forward.1} parent=1 // pred_region
      %s75 = ssub.s32 80, 80
      %76 = vsyncadd [#allocation9], %s75
      %s77 = sshll.u32 [#allocation8], 4
      %s78 = int_to_ptr.vmem [resolvable:$true] %s77
      %83 = dma.hbm_to_vmem [thread:$0]  %s9, 80, %s78, [#allocation9], 16, 16, 1
    $region41: #{net_forward.1} parent=1 // pred_fallthru
      _
    // Predicated region
    $region42: #{net_forward.1} parent=1 // pred_check
      _
    $region43: #{net_forward.1} parent=1 // pred_check_branch
      %85 = sbr.rel (0) target = $region45
    $region44: #{net_forward.1} parent=1 // pred_region
      %s87 = ssub.s32 16, 16
      %88 = vsyncadd [#allocation9], %s87
      %s90 = sshll.u32 [#allocation10], 4
      %s91 = int_to_ptr.vmem [resolvable:$true] %s90
      %93 = dma.hbm_to_vmem [thread:$0]  %s10, 16, %s91, [#allocation9]
    $region45: #{net_forward.1} parent=1 // pred_fallthru
      _
    // Predicated region
    $region46: #{net_forward.1} parent=1 // pred_check
      _
    $region47: #{net_forward.1} parent=1 // pred_check_branch
      %95 = sbr.rel (0) target = $region49
    $region48: #{net_forward.1} parent=1 // pred_region
      %s97 = ssub.s32 16, 16
      %98 = vsyncadd [#allocation12], %s97
      %s100 = sshll.u32 [#allocation11], 4
      %s101 = int_to_ptr.vmem [resolvable:$true] %s100
      %103 = dma.hbm_to_vmem [thread:$0]  %s11, 16, %s101, [#allocation12]
    $region49: #{net_forward.1} parent=1 // pred_fallthru
      _
    // Predicated region
    $region50: #{net_forward.1} parent=1 // pred_check
      _
    $region51: #{net_forward.1} parent=1 // pred_check_branch
      %105 = sbr.rel (0) target = $region53
    $region52: #{net_forward.1} parent=1 // pred_region
      %s107 = ssub.s32 1024, 1024
      %108 = vsyncadd [#allocation12], %s107
      %s109 = sshll.u32 [#allocation13], 4
      %s110 = int_to_ptr.vmem [resolvable:$true] %s109
      %115 = dma.hbm_to_vmem [thread:$0]  %s12, 1024, %s110, [#allocation12], 64, 64, 4
    $region53: #{net_forward.1} parent=1 // pred_fallthru
      _
    // Predicated region
    $region54: #{net_forward.1} parent=1 // pred_check
      _
    $region55: #{net_forward.1} parent=1 // pred_check_branch
      %117 = sbr.rel (0) target = $region57
    $region56: #{net_forward.1} parent=1 // pred_region
      %s119 = ssub.s32 16, 16
      %120 = vsyncadd [#allocation15], %s119
      %s122 = sshll.u32 [#allocation14], 4
      %s123 = int_to_ptr.vmem [resolvable:$true] %s122
      %125 = dma.hbm_to_vmem [thread:$0]  %s13, 16, %s123, [#allocation15]
    $region57: #{net_forward.1} parent=1 // pred_fallthru
      _
    // Predicated region
    $region58: #{net_forward.1} parent=1 // pred_check
      _
    $region59: #{net_forward.1} parent=1 // pred_check_branch
      %127 = sbr.rel (0) target = $region61
    $region60: #{net_forward.1} parent=1 // pred_region
      %s129 = ssub.s32 1024, 1024
      %130 = vsyncadd [#allocation15], %s129
      %s131 = sshll.u32 [#allocation16], 4
      %s132 = int_to_ptr.vmem [resolvable:$true] %s131
      %137 = dma.hbm_to_vmem [thread:$0]  %s14, 1024, %s132, [#allocation15], 64, 64, 4
    $region61: #{net_forward.1} parent=1 // pred_fallthru
      _
    // Predicated region
    $region62: #{net_forward.1} parent=1 // pred_check
      _
    $region63: #{net_forward.1} parent=1 // pred_check_branch
      %139 = sbr.rel (0) target = $region65
    $region64: #{net_forward.1} parent=1 // pred_region
      %s141 = ssub.s32 16, 16
      %142 = vsyncadd [#allocation18], %s141
      %s144 = sshll.u32 [#allocation17], 4
      %s145 = int_to_ptr.vmem [resolvable:$true] %s144
      %147 = dma.hbm_to_vmem [thread:$0]  %s15, 16, %s145, [#allocation18]
    $region65: #{net_forward.1} parent=1 // pred_fallthru
      _
    // Predicated region
    $region66: #{net_forward.1} parent=1 // pred_check
      _
    $region67: #{net_forward.1} parent=1 // pred_check_branch
      %149 = sbr.rel (0) target = $region69
    $region68: #{net_forward.1} parent=1 // pred_region
      %150 = dma.done [#allocation3], 16
    $region69: #{net_forward.1} parent=1 // pred_fallthru
      _
    // Predicated region
    $region70: #{net_forward.1} parent=1 // pred_check
      _
    $region71: #{net_forward.1} parent=1 // pred_check_branch
      %152 = sbr.rel (0) target = $region73
    $region72: #{net_forward.1} parent=1 // pred_region
      %153 = dma.done [#allocation6], 16
    $region73: #{net_forward.1} parent=1 // pred_fallthru
      _
    // Predicated region
    $region74: #{net_forward.1} parent=1 // pred_check
      _
    $region75: #{net_forward.1} parent=1 // pred_check_branch
      %155 = sbr.rel (0) target = $region77
    $region76: #{net_forward.1} parent=1 // pred_region
      %156 = dma.done [#allocation6], 5120
    $region77: #{net_forward.1} parent=1 // pred_fallthru
      _
    // Predicated region
    $region78: #{net_forward.1} parent=1 // pred_check
      _
    $region79: #{net_forward.1} parent=1 // pred_check_branch
      %158 = sbr.rel (0) target = $region81
    $region80: #{net_forward.1} parent=1 // pred_region
      %159 = dma.done [#allocation9], 80
    $region81: #{net_forward.1} parent=1 // pred_fallthru
      _
    // Predicated region
    $region82: #{net_forward.1} parent=1 // pred_check
      _
    $region83: #{net_forward.1} parent=1 // pred_check_branch
      %161 = sbr.rel (0) target = $region85
    $region84: #{net_forward.1} parent=1 // pred_region
      %162 = dma.done [#allocation9], 16
    $region85: #{net_forward.1} parent=1 // pred_fallthru
      _
    // Predicated region
    $region86: #{net_forward.1} parent=1 // pred_check
      _
    $region87: #{net_forward.1} parent=1 // pred_check_branch
      %164 = sbr.rel (0) target = $region89
    $region88: #{net_forward.1} parent=1 // pred_region
      %165 = dma.done [#allocation12], 16
    $region89: #{net_forward.1} parent=1 // pred_fallthru
      _
    // Predicated region
    $region90: #{net_forward.1} parent=1 // pred_check
      _
    $region91: #{net_forward.1} parent=1 // pred_check_branch
      %167 = sbr.rel (0) target = $region93
    $region92: #{net_forward.1} parent=1 // pred_region
      %168 = dma.done [#allocation12], 1024
    $region93: #{net_forward.1} parent=1 // pred_fallthru
      _
    // Predicated region
    $region94: #{net_forward.1} parent=1 // pred_check
      _
    $region95: #{net_forward.1} parent=1 // pred_check_branch
      %170 = sbr.rel (0) target = $region97
    $region96: #{net_forward.1} parent=1 // pred_region
      %171 = dma.done [#allocation15], 16
    $region97: #{net_forward.1} parent=1 // pred_fallthru
      _
    // Predicated region
    $region98: #{net_forward.1} parent=1 // pred_check
      _
    $region99: #{net_forward.1} parent=1 // pred_check_branch
      %173 = sbr.rel (0) target = $region101
    $region100: #{net_forward.1} parent=1 // pred_region
      %174 = dma.done [#allocation15], 1024
    $region101: #{net_forward.1} parent=1 // pred_fallthru
      _
    // Predicated region
    $region102: #{net_forward.1} parent=1 // pred_check
      _
    $region103: #{net_forward.1} parent=1 // pred_check_branch
      %176 = sbr.rel (0) target = $region105
    $region104: #{net_forward.1} parent=1 // pred_region
      %177 = dma.done [#allocation18], 16
    $region105: #{net_forward.1} parent=1 // pred_fallthru
      _
    %v179 = vld [vmem:[%s0] sm:$0xff]
    %v180 = vld [vmem:[%s0 + $0x8] sm:$0xff]
    %v181 = vld [vmem:[%s2] sm:$0x1]
    %183 = vset.pattern.permute.xlu0 0
    %184 = vperm.xlu0 %183, %v179
    %v185 = vpop.permute.xlu0 %184
    %188 = vset.pattern.permute.xlu0 0
    %189 = vperm.xlu0 %188, %v180
    %v190 = vpop.permute.xlu0 %189
    %v193 = vlaneseq
    %v194 = vshrl.u32 %v193, 7
    %v195 = vsub.s32 0, %v194
    %v196 = vrot.slane %v181, %v195
    %v198 = vmul.f32 %v185, %v196
    %v199 = vmul.f32 %v190, %v196
    %v200 = vld [vmem:[%s1] sm:$0xff]
    %v201 = vld [vmem:[%s1 + $0x8] sm:$0xff]
    %v202 = vld [vmem:[%s3] sm:$0x1]
    %204 = vset.pattern.permute.xlu0 0
    %205 = vperm.xlu0 %204, %v200
    %v206 = vpop.permute.xlu0 %205
    %209 = vset.pattern.permute.xlu0 0
    %210 = vperm.xlu0 %209, %v201
    %v211 = vpop.permute.xlu0 %210
    %v214 = vlaneseq
    %v215 = vshrl.u32 %v214, 7
    %v216 = vsub.s32 0, %v215
    %v217 = vrot.slane %v202, %v216
    %v219 = vmul.f32 %v206, %v217
    %v220 = vmul.f32 %v211, %v217
    %v221 = vadd.f32 %v198, %v219
    %v222 = vadd.f32 %v199, %v220
    %v223 = vld [vmem:[#allocation2] sm:$0x1]
    %v225 = vlaneseq
    %v226 = vshrl.u32 %v225, 7
    %v227 = vsub.s32 0, %v226
    %v228 = vrot.slane %v223, %v227
    %v230 = vadd.f32 %v221, %v228
    %v231 = vadd.f32 %v222, %v228
    %v232 = vrot.slane %v230, 4
    %v233 = vadd.f32 %v230, %v232
    %v234 = vrot.slane %v233, 2
    %v235 = vadd.f32 %v233, %v234
    %v236 = vrot.slane %v235, 1
    %v237 = vadd.f32 %v235, %v236
    %v238 = vrot.slane %v231, 4
    %v239 = vadd.f32 %v231, %v238
    %v240 = vrot.slane %v239, 2
    %v241 = vadd.f32 %v239, %v240
    %v242 = vrot.slane %v241, 1
    %v243 = vadd.f32 %v241, %v242
    %v244 = vrcp.pop 8.0
    %v245 = vmul.f32 %v237, %v244
    %v246 = vmul.f32 %v243, %v244
    %v247 = vpack.c.bf16 %v245, %v245
    %v248 = vpack.c.bf16 %v246, %v246
    %v249 = vld [vmem:[%s5] sm:$0xf]
    %v250 = vld [vmem:[%s5 + $0x4] sm:$0xf]
    %v251 = vld [vmem:[%s5 + $0x8] sm:$0xf]
    %v252 = vld [vmem:[%s5 + $0xc] sm:$0xf]
    %v253 = vld [vmem:[%s5 + $0x10] sm:$0xf]
    %v254 = vld [vmem:[%s5 + $0x14] sm:$0xf]
    %v255 = vld [vmem:[%s5 + $0x18] sm:$0xf]
    %v256 = vld [vmem:[%s5 + $0x1c] sm:$0xf]
    %v257 = vld [vmem:[%s5 + $0x20] sm:$0xf]
    %v258 = vld [vmem:[%s5 + $0x24] sm:$0xf]
    %v259 = vld [vmem:[%s5 + $0x28] sm:$0xf]
    %v260 = vld [vmem:[%s5 + $0x2c] sm:$0xf]
    %v261 = vld [vmem:[%s5 + $0x30] sm:$0xf]
    %v262 = vld [vmem:[%s5 + $0x34] sm:$0xf]
    %v263 = vld [vmem:[%s5 + $0x38] sm:$0xf]
    %v264 = vld [vmem:[%s5 + $0x3c] sm:$0xf]
    %v265 = vld [vmem:[#allocation5] sm:$0x1]
    %v267 = vlaneseq
    %v268 = vshrl.u32 %v267, 7
    %v269 = vsub.s32 0, %v268
    %v270 = vrot.slane %v265, %v269
    %v274 = vunpack.c.l.b16 %v247
    %v275 = vunpack.c.l.b16 %v248
    %vm276 = vcmask 1041409
    %v277 = vsel %vm276, %v275, %v274
    %v278 = vpack.c.b16 %v277, %v277
    %v296 = vunpack.c.l.b16 %v249
    %v297 = vunpack.c.l.b16 %v250
    %v298 = vunpack.c.l.b16 %v251
    %v299 = vunpack.c.l.b16 %v252
    %v300 = vunpack.c.l.b16 %v253
    %v301 = vunpack.c.l.b16 %v254
    %v302 = vunpack.c.l.b16 %v255
    %v303 = vunpack.c.l.b16 %v256
    %v304 = vunpack.c.l.b16 %v257
    %v305 = vunpack.c.l.b16 %v258
    %v306 = vunpack.c.l.b16 %v259
    %v307 = vunpack.c.l.b16 %v260
    %v308 = vunpack.c.l.b16 %v261
    %v309 = vunpack.c.l.b16 %v262
    %v310 = vunpack.c.l.b16 %v263
    %v311 = vunpack.c.l.b16 %v264
    %v312 = vpack.c.b16 %v297, %v296
    %v313 = vpack.c.b16 %v299, %v298
    %v314 = vpack.c.b16 %v301, %v300
    %v315 = vpack.c.b16 %v303, %v302
    %v316 = vpack.c.b16 %v305, %v304
    %v317 = vpack.c.b16 %v307, %v306
    %v318 = vpack.c.b16 %v309, %v308
    %v319 = vpack.c.b16 %v311, %v310
    %328 = vmatprep.subr.bf16.mxu0 0
    %329 = vmatpush1.bf16.msra.mxu0 %v312
    %330 = vmatprep.subr.bf16.mxu0 0
    %331 = vmatpush1.bf16.msra.mxu0 %v313
    %332 = vmatprep.subr.bf16.mxu0 0
    %333 = vmatpush1.bf16.msra.mxu0 %v314
    %334 = vmatprep.subr.bf16.mxu0 0
    %335 = vmatpush1.bf16.msra.mxu0 %v315
    %336 = vmatprep.subr.bf16.mxu0 0
    %337 = vmatpush1.bf16.msra.mxu0 %v316
    %338 = vmatprep.subr.bf16.mxu0 0
    %339 = vmatpush1.bf16.msra.mxu0 %v317
    %340 = vmatprep.subr.bf16.mxu0 0
    %341 = vmatpush1.bf16.msra.mxu0 %v318
    %342 = vmatprep.subr.bf16.mxu0 0
    %343 = vmatpush1.bf16.msra.mxu0 %v319
    %344 = vmatprep.subr.bf16.mxu0 0
    %345 = vmatpush1.bf16.msra.mxu0 0
    %346 = vmatprep.subr.bf16.mxu0 0
    %347 = vmatpush1.bf16.msra.mxu0 0
    %348 = vmatprep.subr.bf16.mxu0 0
    %349 = vmatpush1.bf16.msra.mxu0 0
    %350 = vmatprep.subr.bf16.mxu0 0
    %351 = vmatpush1.bf16.msra.mxu0 0
    %352 = vmatprep.subr.bf16.mxu0 0
    %353 = vmatpush1.bf16.msra.mxu0 0
    %354 = vmatprep.subr.bf16.mxu0 0
    %355 = vmatpush1.bf16.msra.mxu0 0
    %356 = vmatprep.subr.bf16.mxu0 0
    %357 = vmatpush1.bf16.msra.mxu0 0
    %358 = vmatprep.subr.bf16.mxu0 0
    %359 = vmatpush1.bf16.msra.mxu0 0
    %360 = vmatprep.mubr.bf16.mxu0 0
    %361 = vmatmul.mubr.bf16.gmra.mrb[0].mxu0 %v278
    %v362 = vpop.f32.mrb[0].mxu0
    %v363 = vadd.f32 %v270, %v362
    %v364 = vpop.f32.mrb[0].mxu0
    %v365 = vpop.f32.mrb[0].mxu0
    %v366 = vpop.f32.mrb[0].mxu0
    %367 = vdwg.mxu0
    %v370 = vunpack.c.l.s4 1966171168
    %v371 = vunpack.c.0.s8 %v370
    %v372 = vlaneseq
    %v373 = vshrl.u32 %v372, 7
    %v374 = vsub.s32 %v371, %v373
    %v375 = vrot.slane %v363, %v374
    %v376 = vcombine.high %v375, %v375
    %v378 = vunpack.c.l.s4 1966171168
    %v379 = vunpack.c.0.s8 %v378
    %v380 = vlaneseq
    %v381 = vshrl.u32 %v380, 7
    %v382 = vsub.s32 %v379, %v381
    %v383 = vrot.slane %v375, %v382
    %v385 = vunpack.c.l.s4 1966171168
    %v386 = vunpack.c.0.s8 %v385
    %v387 = vlaneseq
    %v388 = vshrl.u32 %v387, 7
    %v389 = vsub.s32 %v386, %v388
    %v390 = vrot.slane %v376, %v389
    %v391 = vlaneseq
    %v392 = vshrl.u32 %v391, 7
    %v393 = vsub.s32 0, %v392
    %v394 = vrot.slane %v383, %v393
    %v395 = vlaneseq
    %v396 = vshrl.u32 %v395, 7
    %v397 = vsub.s32 0, %v396
    %v398 = vrot.slane %v390, %v397
    %v401 = vpack.c.bf16 %v231, %v230
    %v402 = vld [vmem:[%s6] sm:$0xf]
    %v403 = vld [vmem:[%s6 + $0x4] sm:$0xf]
    %v404 = vld [vmem:[%s6 + $0x8] sm:$0xf]
    %v405 = vld [vmem:[%s6 + $0xc] sm:$0xf]
    %v406 = vld [vmem:[%s6 + $0x10] sm:$0xf]
    %v407 = vld [vmem:[%s6 + $0x14] sm:$0xf]
    %v408 = vld [vmem:[%s6 + $0x18] sm:$0xf]
    %v409 = vld [vmem:[%s6 + $0x1c] sm:$0xf]
    %v410 = vld [vmem:[%s6 + $0x20] sm:$0xf]
    %v411 = vld [vmem:[%s6 + $0x24] sm:$0xf]
    %v412 = vld [vmem:[%s6 + $0x28] sm:$0xf]
    %v413 = vld [vmem:[%s6 + $0x2c] sm:$0xf]
    %v414 = vld [vmem:[%s6 + $0x30] sm:$0xf]
    %v415 = vld [vmem:[%s6 + $0x34] sm:$0xf]
    %v416 = vld [vmem:[%s6 + $0x38] sm:$0xf]
    %v417 = vld [vmem:[%s6 + $0x3c] sm:$0xf]
    %v434 = vunpack.c.l.b16 %v402
    %v435 = vunpack.c.l.b16 %v403
    %v436 = vunpack.c.l.b16 %v404
    %v437 = vunpack.c.l.b16 %v405
    %v438 = vunpack.c.l.b16 %v406
    %v439 = vunpack.c.l.b16 %v407
    %v440 = vunpack.c.l.b16 %v408
    %v441 = vunpack.c.l.b16 %v409
    %v442 = vunpack.c.l.b16 %v410
    %v443 = vunpack.c.l.b16 %v411
    %v444 = vunpack.c.l.b16 %v412
    %v445 = vunpack.c.l.b16 %v413
    %v446 = vunpack.c.l.b16 %v414
    %v447 = vunpack.c.l.b16 %v415
    %v448 = vunpack.c.l.b16 %v416
    %v449 = vunpack.c.l.b16 %v417
    %v450 = vpack.c.b16 %v435, %v434
    %v451 = vpack.c.b16 %v437, %v436
    %v452 = vpack.c.b16 %v439, %v438
    %v453 = vpack.c.b16 %v441, %v440
    %v454 = vpack.c.b16 %v443, %v442
    %v455 = vpack.c.b16 %v445, %v444
    %v456 = vpack.c.b16 %v447, %v446
    %v457 = vpack.c.b16 %v449, %v448
    %466 = vmatprep.subr.bf16.mxu0 0
    %467 = vmatpush1.bf16.msra.mxu0 %v450
    %468 = vmatprep.subr.bf16.mxu0 0
    %469 = vmatpush1.bf16.msra.mxu0 %v451
    %470 = vmatprep.subr.bf16.mxu0 0
    %471 = vmatpush1.bf16.msra.mxu0 %v452
    %472 = vmatprep.subr.bf16.mxu0 0
    %473 = vmatpush1.bf16.msra.mxu0 %v453
    %474 = vmatprep.subr.bf16.mxu0 0
    %475 = vmatpush1.bf16.msra.mxu0 %v454
    %476 = vmatprep.subr.bf16.mxu0 0
    %477 = vmatpush1.bf16.msra.mxu0 %v455
    %478 = vmatprep.subr.bf16.mxu0 0
    %479 = vmatpush1.bf16.msra.mxu0 %v456
    %480 = vmatprep.subr.bf16.mxu0 0
    %481 = vmatpush1.bf16.msra.mxu0 %v457
    %482 = vmatprep.subr.bf16.mxu0 0
    %483 = vmatpush1.bf16.msra.mxu0 0
    %484 = vmatprep.subr.bf16.mxu0 0
    %485 = vmatpush1.bf16.msra.mxu0 0
    %486 = vmatprep.subr.bf16.mxu0 0
    %487 = vmatpush1.bf16.msra.mxu0 0
    %488 = vmatprep.subr.bf16.mxu0 0
    %489 = vmatpush1.bf16.msra.mxu0 0
    %490 = vmatprep.subr.bf16.mxu0 0
    %491 = vmatpush1.bf16.msra.mxu0 0
    %492 = vmatprep.subr.bf16.mxu0 0
    %493 = vmatpush1.bf16.msra.mxu0 0
    %494 = vmatprep.subr.bf16.mxu0 0
    %495 = vmatpush1.bf16.msra.mxu0 0
    %496 = vmatprep.subr.bf16.mxu0 0
    %497 = vmatpush1.bf16.msra.mxu0 0
    %498 = vmatprep.mubr.bf16.mxu0 0
    %499 = vmatmul.mubr.bf16.gmra.mrb[0].mxu0 %v401
    %v500 = vpop.f32.mrb[0].mxu0
    %v501 = vadd.f32 0.0, %v500
    %v502 = vpop.f32.mrb[0].mxu0
    %v503 = vpop.f32.mrb[0].mxu0
    %v504 = vadd.f32 0.0, %v503
    %v505 = vpop.f32.mrb[0].mxu0
    %506 = vdwg.mxu0
    %v507 = vadd.f32 %v394, %v501
    %v508 = vadd.f32 %v398, %v504
    %v509 = vmax.f32 %v507, 0.0
    %v510 = vmax.f32 %v508, 0.0
    %v511 = vpack.c.bf16 %v510, %v509
    %v512 = vld [vmem:[#allocation7] sm:$0xf]
    %v513 = vld [vmem:[#allocation7 + $0x4] sm:$0xf]
    %v514 = vld [vmem:[#allocation7 + $0x8] sm:$0xf]
    %v515 = vld [vmem:[#allocation7 + $0xc] sm:$0xf]
    %v516 = vld [vmem:[#allocation7 + $0x10] sm:$0xf]
    %v517 = vld [vmem:[#allocation7 + $0x14] sm:$0xf]
    %v518 = vld [vmem:[#allocation7 + $0x18] sm:$0xf]
    %v519 = vld [vmem:[#allocation7 + $0x1c] sm:$0xf]
    %v520 = vld [vmem:[#allocation7 + $0x20] sm:$0xf]
    %v521 = vld [vmem:[#allocation7 + $0x24] sm:$0xf]
    %v522 = vld [vmem:[#allocation7 + $0x28] sm:$0xf]
    %v523 = vld [vmem:[#allocation7 + $0x2c] sm:$0xf]
    %v524 = vld [vmem:[#allocation7 + $0x30] sm:$0xf]
    %v525 = vld [vmem:[#allocation7 + $0x34] sm:$0xf]
    %v526 = vld [vmem:[#allocation7 + $0x38] sm:$0xf]
    %v527 = vld [vmem:[#allocation7 + $0x3c] sm:$0xf]
    %v528 = vld [vmem:[#allocation8] sm:$0x1]
    %v530 = vlaneseq
    %v531 = vshrl.u32 %v530, 7
    %v532 = vsub.s32 0, %v531
    %v533 = vrot.slane %v528, %v532
    %v551 = vunpack.c.l.b16 %v512
    %v552 = vunpack.c.l.b16 %v513
    %v553 = vunpack.c.l.b16 %v514
    %v554 = vunpack.c.l.b16 %v515
    %v555 = vunpack.c.l.b16 %v516
    %v556 = vunpack.c.l.b16 %v517
    %v557 = vunpack.c.l.b16 %v518
    %v558 = vunpack.c.l.b16 %v519
    %v559 = vunpack.c.l.b16 %v520
    %v560 = vunpack.c.l.b16 %v521
    %v561 = vunpack.c.l.b16 %v522
    %v562 = vunpack.c.l.b16 %v523
    %v563 = vunpack.c.l.b16 %v524
    %v564 = vunpack.c.l.b16 %v525
    %v565 = vunpack.c.l.b16 %v526
    %v566 = vunpack.c.l.b16 %v527
    %v567 = vpack.c.b16 %v552, %v551
    %v568 = vpack.c.b16 %v554, %v553
    %v569 = vpack.c.b16 %v556, %v555
    %v570 = vpack.c.b16 %v558, %v557
    %v571 = vpack.c.b16 %v560, %v559
    %v572 = vpack.c.b16 %v562, %v561
    %v573 = vpack.c.b16 %v564, %v563
    %v574 = vpack.c.b16 %v566, %v565
    %583 = vmatprep.subr.bf16.mxu0 0
    %584 = vmatpush1.bf16.msra.mxu0 %v567
    %585 = vmatprep.subr.bf16.mxu0 0
    %586 = vmatpush1.bf16.msra.mxu0 %v568
    %587 = vmatprep.subr.bf16.mxu0 0
    %588 = vmatpush1.bf16.msra.mxu0 %v569
    %589 = vmatprep.subr.bf16.mxu0 0
    %590 = vmatpush1.bf16.msra.mxu0 %v570
    %591 = vmatprep.subr.bf16.mxu0 0
    %592 = vmatpush1.bf16.msra.mxu0 %v571
    %593 = vmatprep.subr.bf16.mxu0 0
    %594 = vmatpush1.bf16.msra.mxu0 %v572
    %595 = vmatprep.subr.bf16.mxu0 0
    %596 = vmatpush1.bf16.msra.mxu0 %v573
    %597 = vmatprep.subr.bf16.mxu0 0
    %598 = vmatpush1.bf16.msra.mxu0 %v574
    %599 = vmatprep.subr.bf16.mxu0 0
    %600 = vmatpush1.bf16.msra.mxu0 0
    %601 = vmatprep.subr.bf16.mxu0 0
    %602 = vmatpush1.bf16.msra.mxu0 0
    %603 = vmatprep.subr.bf16.mxu0 0
    %604 = vmatpush1.bf16.msra.mxu0 0
    %605 = vmatprep.subr.bf16.mxu0 0
    %606 = vmatpush1.bf16.msra.mxu0 0
    %607 = vmatprep.subr.bf16.mxu0 0
    %608 = vmatpush1.bf16.msra.mxu0 0
    %609 = vmatprep.subr.bf16.mxu0 0
    %610 = vmatpush1.bf16.msra.mxu0 0
    %611 = vmatprep.subr.bf16.mxu0 0
    %612 = vmatpush1.bf16.msra.mxu0 0
    %613 = vmatprep.subr.bf16.mxu0 0
    %614 = vmatpush1.bf16.msra.mxu0 0
    %615 = vmatprep.mubr.bf16.mxu0 0
    %616 = vmatmul.mubr.bf16.gmra.mrb[0].mxu0 %v511
    %v617 = vpop.f32.mrb[0].mxu0
    %v618 = vadd.f32 %v533, %v617
    %v619 = vpop.f32.mrb[0].mxu0
    %v620 = vpop.f32.mrb[0].mxu0
    %v621 = vadd.f32 %v533, %v620
    %v622 = vpop.f32.mrb[0].mxu0
    %623 = vdwg.mxu0
    %v624 = vmax.f32 %v618, 0.0
    %v625 = vmax.f32 %v621, 0.0
    %v626 = vpack.c.bf16 %v625, %v624
    %s627 = scalar_lea.vmem [#allocation7], 64
    %v628 = vld [vmem:[%s627] sm:$0xf]
    %v629 = vld [vmem:[%s627 + $0x4] sm:$0xf]
    %v630 = vld [vmem:[%s627 + $0x8] sm:$0xf]
    %v631 = vld [vmem:[%s627 + $0xc] sm:$0xf]
    %v632 = vld [vmem:[%s627 + $0x10] sm:$0xf]
    %v633 = vld [vmem:[%s627 + $0x14] sm:$0xf]
    %v634 = vld [vmem:[%s627 + $0x18] sm:$0xf]
    %v635 = vld [vmem:[%s627 + $0x1c] sm:$0xf]
    %v636 = vld [vmem:[%s627 + $0x20] sm:$0xf]
    %v637 = vld [vmem:[%s627 + $0x24] sm:$0xf]
    %v638 = vld [vmem:[%s627 + $0x28] sm:$0xf]
    %v639 = vld [vmem:[%s627 + $0x2c] sm:$0xf]
    %v640 = vld [vmem:[%s627 + $0x30] sm:$0xf]
    %v641 = vld [vmem:[%s627 + $0x34] sm:$0xf]
    %v642 = vld [vmem:[%s627 + $0x38] sm:$0xf]
    %v643 = vld [vmem:[%s627 + $0x3c] sm:$0xf]
    %s644 = scalar_lea.vmem [#allocation8], 1
    %v645 = vld [vmem:[%s644] sm:$0x1]
    %v647 = vlaneseq
    %v648 = vshrl.u32 %v647, 7
    %v649 = vsub.s32 0, %v648
    %v650 = vrot.slane %v645, %v649
    %v668 = vunpack.c.l.b16 %v628
    %v669 = vunpack.c.l.b16 %v629
    %v670 = vunpack.c.l.b16 %v630
    %v671 = vunpack.c.l.b16 %v631
    %v672 = vunpack.c.l.b16 %v632
    %v673 = vunpack.c.l.b16 %v633
    %v674 = vunpack.c.l.b16 %v634
    %v675 = vunpack.c.l.b16 %v635
    %v676 = vunpack.c.l.b16 %v636
    %v677 = vunpack.c.l.b16 %v637
    %v678 = vunpack.c.l.b16 %v638
    %v679 = vunpack.c.l.b16 %v639
    %v680 = vunpack.c.l.b16 %v640
    %v681 = vunpack.c.l.b16 %v641
    %v682 = vunpack.c.l.b16 %v642
    %v683 = vunpack.c.l.b16 %v643
    %v684 = vpack.c.b16 %v669, %v668
    %v685 = vpack.c.b16 %v671, %v670
    %v686 = vpack.c.b16 %v673, %v672
    %v687 = vpack.c.b16 %v675, %v674
    %v688 = vpack.c.b16 %v677, %v676
    %v689 = vpack.c.b16 %v679, %v678
    %v690 = vpack.c.b16 %v681, %v680
    %v691 = vpack.c.b16 %v683, %v682
    %700 = vmatprep.subr.bf16.mxu0 0
    %701 = vmatpush1.bf16.msra.mxu0 %v684
    %702 = vmatprep.subr.bf16.mxu0 0
    %703 = vmatpush1.bf16.msra.mxu0 %v685
    %704 = vmatprep.subr.bf16.mxu0 0
    %705 = vmatpush1.bf16.msra.mxu0 %v686
    %706 = vmatprep.subr.bf16.mxu0 0
    %707 = vmatpush1.bf16.msra.mxu0 %v687
    %708 = vmatprep.subr.bf16.mxu0 0
    %709 = vmatpush1.bf16.msra.mxu0 %v688
    %710 = vmatprep.subr.bf16.mxu0 0
    %711 = vmatpush1.bf16.msra.mxu0 %v689
    %712 = vmatprep.subr.bf16.mxu0 0
    %713 = vmatpush1.bf16.msra.mxu0 %v690
    %714 = vmatprep.subr.bf16.mxu0 0
    %715 = vmatpush1.bf16.msra.mxu0 %v691
    %716 = vmatprep.subr.bf16.mxu0 0
    %717 = vmatpush1.bf16.msra.mxu0 0
    %718 = vmatprep.subr.bf16.mxu0 0
    %719 = vmatpush1.bf16.msra.mxu0 0
    %720 = vmatprep.subr.bf16.mxu0 0
    %721 = vmatpush1.bf16.msra.mxu0 0
    %722 = vmatprep.subr.bf16.mxu0 0
    %723 = vmatpush1.bf16.msra.mxu0 0
    %724 = vmatprep.subr.bf16.mxu0 0
    %725 = vmatpush1.bf16.msra.mxu0 0
    %726 = vmatprep.subr.bf16.mxu0 0
    %727 = vmatpush1.bf16.msra.mxu0 0
    %728 = vmatprep.subr.bf16.mxu0 0
    %729 = vmatpush1.bf16.msra.mxu0 0
    %730 = vmatprep.subr.bf16.mxu0 0
    %731 = vmatpush1.bf16.msra.mxu0 0
    %732 = vmatprep.mubr.bf16.mxu0 0
    %733 = vmatmul.mubr.bf16.gmra.mrb[0].mxu0 %v626
    %v734 = vpop.f32.mrb[0].mxu0
    %v735 = vadd.f32 %v650, %v734
    %v736 = vpop.f32.mrb[0].mxu0
    %v737 = vpop.f32.mrb[0].mxu0
    %v738 = vadd.f32 %v650, %v737
    %v739 = vpop.f32.mrb[0].mxu0
    %740 = vdwg.mxu0
    %v741 = vmax.f32 %v735, 0.0
    %v742 = vmax.f32 %v738, 0.0
    %v743 = vpack.c.bf16 %v742, %v741
    %s744 = scalar_lea.vmem [#allocation7], 128
    %v745 = vld [vmem:[%s744] sm:$0xf]
    %v746 = vld [vmem:[%s744 + $0x4] sm:$0xf]
    %v747 = vld [vmem:[%s744 + $0x8] sm:$0xf]
    %v748 = vld [vmem:[%s744 + $0xc] sm:$0xf]
    %v749 = vld [vmem:[%s744 + $0x10] sm:$0xf]
    %v750 = vld [vmem:[%s744 + $0x14] sm:$0xf]
    %v751 = vld [vmem:[%s744 + $0x18] sm:$0xf]
    %v752 = vld [vmem:[%s744 + $0x1c] sm:$0xf]
    %v753 = vld [vmem:[%s744 + $0x20] sm:$0xf]
    %v754 = vld [vmem:[%s744 + $0x24] sm:$0xf]
    %v755 = vld [vmem:[%s744 + $0x28] sm:$0xf]
    %v756 = vld [vmem:[%s744 + $0x2c] sm:$0xf]
    %v757 = vld [vmem:[%s744 + $0x30] sm:$0xf]
    %v758 = vld [vmem:[%s744 + $0x34] sm:$0xf]
    %v759 = vld [vmem:[%s744 + $0x38] sm:$0xf]
    %v760 = vld [vmem:[%s744 + $0x3c] sm:$0xf]
    %s761 = scalar_lea.vmem [#allocation8], 2
    %v762 = vld [vmem:[%s761] sm:$0x1]
    %v764 = vlaneseq
    %v765 = vshrl.u32 %v764, 7
    %v766 = vsub.s32 0, %v765
    %v767 = vrot.slane %v762, %v766
    %v785 = vunpack.c.l.b16 %v745
    %v786 = vunpack.c.l.b16 %v746
    %v787 = vunpack.c.l.b16 %v747
    %v788 = vunpack.c.l.b16 %v748
    %v789 = vunpack.c.l.b16 %v749
    %v790 = vunpack.c.l.b16 %v750
    %v791 = vunpack.c.l.b16 %v751
    %v792 = vunpack.c.l.b16 %v752
    %v793 = vunpack.c.l.b16 %v753
    %v794 = vunpack.c.l.b16 %v754
    %v795 = vunpack.c.l.b16 %v755
    %v796 = vunpack.c.l.b16 %v756
    %v797 = vunpack.c.l.b16 %v757
    %v798 = vunpack.c.l.b16 %v758
    %v799 = vunpack.c.l.b16 %v759
    %v800 = vunpack.c.l.b16 %v760
    %v801 = vpack.c.b16 %v786, %v785
    %v802 = vpack.c.b16 %v788, %v787
    %v803 = vpack.c.b16 %v790, %v789
    %v804 = vpack.c.b16 %v792, %v791
    %v805 = vpack.c.b16 %v794, %v793
    %v806 = vpack.c.b16 %v796, %v795
    %v807 = vpack.c.b16 %v798, %v797
    %v808 = vpack.c.b16 %v800, %v799
    %817 = vmatprep.subr.bf16.mxu0 0
    %818 = vmatpush1.bf16.msra.mxu0 %v801
    %819 = vmatprep.subr.bf16.mxu0 0
    %820 = vmatpush1.bf16.msra.mxu0 %v802
    %821 = vmatprep.subr.bf16.mxu0 0
    %822 = vmatpush1.bf16.msra.mxu0 %v803
    %823 = vmatprep.subr.bf16.mxu0 0
    %824 = vmatpush1.bf16.msra.mxu0 %v804
    %825 = vmatprep.subr.bf16.mxu0 0
    %826 = vmatpush1.bf16.msra.mxu0 %v805
    %827 = vmatprep.subr.bf16.mxu0 0
    %828 = vmatpush1.bf16.msra.mxu0 %v806
    %829 = vmatprep.subr.bf16.mxu0 0
    %830 = vmatpush1.bf16.msra.mxu0 %v807
    %831 = vmatprep.subr.bf16.mxu0 0
    %832 = vmatpush1.bf16.msra.mxu0 %v808
    %833 = vmatprep.subr.bf16.mxu0 0
    %834 = vmatpush1.bf16.msra.mxu0 0
    %835 = vmatprep.subr.bf16.mxu0 0
    %836 = vmatpush1.bf16.msra.mxu0 0
    %837 = vmatprep.subr.bf16.mxu0 0
    %838 = vmatpush1.bf16.msra.mxu0 0
    %839 = vmatprep.subr.bf16.mxu0 0
    %840 = vmatpush1.bf16.msra.mxu0 0
    %841 = vmatprep.subr.bf16.mxu0 0
    %842 = vmatpush1.bf16.msra.mxu0 0
    %843 = vmatprep.subr.bf16.mxu0 0
    %844 = vmatpush1.bf16.msra.mxu0 0
    %845 = vmatprep.subr.bf16.mxu0 0
    %846 = vmatpush1.bf16.msra.mxu0 0
    %847 = vmatprep.subr.bf16.mxu0 0
    %848 = vmatpush1.bf16.msra.mxu0 0
    %849 = vmatprep.mubr.bf16.mxu0 0
    %850 = vmatmul.mubr.bf16.gmra.mrb[0].mxu0 %v743
    %v851 = vpop.f32.mrb[0].mxu0
    %v852 = vadd.f32 %v767, %v851
    %v853 = vpop.f32.mrb[0].mxu0
    %v854 = vpop.f32.mrb[0].mxu0
    %v855 = vadd.f32 %v767, %v854
    %v856 = vpop.f32.mrb[0].mxu0
    %857 = vdwg.mxu0
    %v858 = vmax.f32 %v852, 0.0
    %v859 = vmax.f32 %v855, 0.0
    %v860 = vpack.c.bf16 %v859, %v858
    %s861 = scalar_lea.vmem [#allocation7], 192
    %v862 = vld [vmem:[%s861] sm:$0xf]
    %v863 = vld [vmem:[%s861 + $0x4] sm:$0xf]
    %v864 = vld [vmem:[%s861 + $0x8] sm:$0xf]
    %v865 = vld [vmem:[%s861 + $0xc] sm:$0xf]
    %v866 = vld [vmem:[%s861 + $0x10] sm:$0xf]
    %v867 = vld [vmem:[%s861 + $0x14] sm:$0xf]
    %v868 = vld [vmem:[%s861 + $0x18] sm:$0xf]
    %v869 = vld [vmem:[%s861 + $0x1c] sm:$0xf]
    %v870 = vld [vmem:[%s861 + $0x20] sm:$0xf]
    %v871 = vld [vmem:[%s861 + $0x24] sm:$0xf]
    %v872 = vld [vmem:[%s861 + $0x28] sm:$0xf]
    %v873 = vld [vmem:[%s861 + $0x2c] sm:$0xf]
    %v874 = vld [vmem:[%s861 + $0x30] sm:$0xf]
    %v875 = vld [vmem:[%s861 + $0x34] sm:$0xf]
    %v876 = vld [vmem:[%s861 + $0x38] sm:$0xf]
    %v877 = vld [vmem:[%s861 + $0x3c] sm:$0xf]
    %s878 = scalar_lea.vmem [#allocation8], 3
    %v879 = vld [vmem:[%s878] sm:$0x1]
    %v881 = vlaneseq
    %v882 = vshrl.u32 %v881, 7
    %v883 = vsub.s32 0, %v882
    %v884 = vrot.slane %v879, %v883
    %v902 = vunpack.c.l.b16 %v862
    %v903 = vunpack.c.l.b16 %v863
    %v904 = vunpack.c.l.b16 %v864
    %v905 = vunpack.c.l.b16 %v865
    %v906 = vunpack.c.l.b16 %v866
    %v907 = vunpack.c.l.b16 %v867
    %v908 = vunpack.c.l.b16 %v868
    %v909 = vunpack.c.l.b16 %v869
    %v910 = vunpack.c.l.b16 %v870
    %v911 = vunpack.c.l.b16 %v871
    %v912 = vunpack.c.l.b16 %v872
    %v913 = vunpack.c.l.b16 %v873
    %v914 = vunpack.c.l.b16 %v874
    %v915 = vunpack.c.l.b16 %v875
    %v916 = vunpack.c.l.b16 %v876
    %v917 = vunpack.c.l.b16 %v877
    %v918 = vpack.c.b16 %v903, %v902
    %v919 = vpack.c.b16 %v905, %v904
    %v920 = vpack.c.b16 %v907, %v906
    %v921 = vpack.c.b16 %v909, %v908
    %v922 = vpack.c.b16 %v911, %v910
    %v923 = vpack.c.b16 %v913, %v912
    %v924 = vpack.c.b16 %v915, %v914
    %v925 = vpack.c.b16 %v917, %v916
    %934 = vmatprep.subr.bf16.mxu0 0
    %935 = vmatpush1.bf16.msra.mxu0 %v918
    %936 = vmatprep.subr.bf16.mxu0 0
    %937 = vmatpush1.bf16.msra.mxu0 %v919
    %938 = vmatprep.subr.bf16.mxu0 0
    %939 = vmatpush1.bf16.msra.mxu0 %v920
    %940 = vmatprep.subr.bf16.mxu0 0
    %941 = vmatpush1.bf16.msra.mxu0 %v921
    %942 = vmatprep.subr.bf16.mxu0 0
    %943 = vmatpush1.bf16.msra.mxu0 %v922
    %944 = vmatprep.subr.bf16.mxu0 0
    %945 = vmatpush1.bf16.msra.mxu0 %v923
    %946 = vmatprep.subr.bf16.mxu0 0
    %947 = vmatpush1.bf16.msra.mxu0 %v924
    %948 = vmatprep.subr.bf16.mxu0 0
    %949 = vmatpush1.bf16.msra.mxu0 %v925
    %950 = vmatprep.subr.bf16.mxu0 0
    %951 = vmatpush1.bf16.msra.mxu0 0
    %952 = vmatprep.subr.bf16.mxu0 0
    %953 = vmatpush1.bf16.msra.mxu0 0
    %954 = vmatprep.subr.bf16.mxu0 0
    %955 = vmatpush1.bf16.msra.mxu0 0
    %956 = vmatprep.subr.bf16.mxu0 0
    %957 = vmatpush1.bf16.msra.mxu0 0
    %958 = vmatprep.subr.bf16.mxu0 0
    %959 = vmatpush1.bf16.msra.mxu0 0
    %960 = vmatprep.subr.bf16.mxu0 0
    %961 = vmatpush1.bf16.msra.mxu0 0
    %962 = vmatprep.subr.bf16.mxu0 0
    %963 = vmatpush1.bf16.msra.mxu0 0
    %964 = vmatprep.subr.bf16.mxu0 0
    %965 = vmatpush1.bf16.msra.mxu0 0
    %966 = vmatprep.mubr.bf16.mxu0 0
    %967 = vmatmul.mubr.bf16.gmra.mrb[0].mxu0 %v860
    %v968 = vpop.f32.mrb[0].mxu0
    %v969 = vadd.f32 %v884, %v968
    %v970 = vpop.f32.mrb[0].mxu0
    %v971 = vpop.f32.mrb[0].mxu0
    %v972 = vadd.f32 %v884, %v971
    %v973 = vpop.f32.mrb[0].mxu0
    %974 = vdwg.mxu0
    %v975 = vmax.f32 %v969, 0.0
    %v976 = vmax.f32 %v972, 0.0
    %v977 = vpack.c.bf16 %v976, %v975
    %s978 = scalar_lea.vmem [#allocation7], 256
    %v979 = vld [vmem:[%s978] sm:$0xf]
    %v980 = vld [vmem:[%s978 + $0x4] sm:$0xf]
    %v981 = vld [vmem:[%s978 + $0x8] sm:$0xf]
    %v982 = vld [vmem:[%s978 + $0xc] sm:$0xf]
    %v983 = vld [vmem:[%s978 + $0x10] sm:$0xf]
    %v984 = vld [vmem:[%s978 + $0x14] sm:$0xf]
    %v985 = vld [vmem:[%s978 + $0x18] sm:$0xf]
    %v986 = vld [vmem:[%s978 + $0x1c] sm:$0xf]
    %v987 = vld [vmem:[%s978 + $0x20] sm:$0xf]
    %v988 = vld [vmem:[%s978 + $0x24] sm:$0xf]
    %v989 = vld [vmem:[%s978 + $0x28] sm:$0xf]
    %v990 = vld [vmem:[%s978 + $0x2c] sm:$0xf]
    %v991 = vld [vmem:[%s978 + $0x30] sm:$0xf]
    %v992 = vld [vmem:[%s978 + $0x34] sm:$0xf]
    %v993 = vld [vmem:[%s978 + $0x38] sm:$0xf]
    %v994 = vld [vmem:[%s978 + $0x3c] sm:$0xf]
    %s995 = scalar_lea.vmem [#allocation8], 4
    %v996 = vld [vmem:[%s995] sm:$0x1]
    %v998 = vlaneseq
    %v999 = vshrl.u32 %v998, 7
    %v1000 = vsub.s32 0, %v999
    %v1001 = vrot.slane %v996, %v1000
    %v1019 = vunpack.c.l.b16 %v979
    %v1020 = vunpack.c.l.b16 %v980
    %v1021 = vunpack.c.l.b16 %v981
    %v1022 = vunpack.c.l.b16 %v982
    %v1023 = vunpack.c.l.b16 %v983
    %v1024 = vunpack.c.l.b16 %v984
    %v1025 = vunpack.c.l.b16 %v985
    %v1026 = vunpack.c.l.b16 %v986
    %v1027 = vunpack.c.l.b16 %v987
    %v1028 = vunpack.c.l.b16 %v988
    %v1029 = vunpack.c.l.b16 %v989
    %v1030 = vunpack.c.l.b16 %v990
    %v1031 = vunpack.c.l.b16 %v991
    %v1032 = vunpack.c.l.b16 %v992
    %v1033 = vunpack.c.l.b16 %v993
    %v1034 = vunpack.c.l.b16 %v994
    %v1035 = vpack.c.b16 %v1020, %v1019
    %v1036 = vpack.c.b16 %v1022, %v1021
    %v1037 = vpack.c.b16 %v1024, %v1023
    %v1038 = vpack.c.b16 %v1026, %v1025
    %v1039 = vpack.c.b16 %v1028, %v1027
    %v1040 = vpack.c.b16 %v1030, %v1029
    %v1041 = vpack.c.b16 %v1032, %v1031
    %v1042 = vpack.c.b16 %v1034, %v1033
    %1051 = vmatprep.subr.bf16.mxu0 0
    %1052 = vmatpush1.bf16.msra.mxu0 %v1035
    %1053 = vmatprep.subr.bf16.mxu0 0
    %1054 = vmatpush1.bf16.msra.mxu0 %v1036
    %1055 = vmatprep.subr.bf16.mxu0 0
    %1056 = vmatpush1.bf16.msra.mxu0 %v1037
    %1057 = vmatprep.subr.bf16.mxu0 0
    %1058 = vmatpush1.bf16.msra.mxu0 %v1038
    %1059 = vmatprep.subr.bf16.mxu0 0
    %1060 = vmatpush1.bf16.msra.mxu0 %v1039
    %1061 = vmatprep.subr.bf16.mxu0 0
    %1062 = vmatpush1.bf16.msra.mxu0 %v1040
    %1063 = vmatprep.subr.bf16.mxu0 0
    %1064 = vmatpush1.bf16.msra.mxu0 %v1041
    %1065 = vmatprep.subr.bf16.mxu0 0
    %1066 = vmatpush1.bf16.msra.mxu0 %v1042
    %1067 = vmatprep.subr.bf16.mxu0 0
    %1068 = vmatpush1.bf16.msra.mxu0 0
    %1069 = vmatprep.subr.bf16.mxu0 0
    %1070 = vmatpush1.bf16.msra.mxu0 0
    %1071 = vmatprep.subr.bf16.mxu0 0
    %1072 = vmatpush1.bf16.msra.mxu0 0
    %1073 = vmatprep.subr.bf16.mxu0 0
    %1074 = vmatpush1.bf16.msra.mxu0 0
    %1075 = vmatprep.subr.bf16.mxu0 0
    %1076 = vmatpush1.bf16.msra.mxu0 0
    %1077 = vmatprep.subr.bf16.mxu0 0
    %1078 = vmatpush1.bf16.msra.mxu0 0
    %1079 = vmatprep.subr.bf16.mxu0 0
    %1080 = vmatpush1.bf16.msra.mxu0 0
    %1081 = vmatprep.subr.bf16.mxu0 0
    %1082 = vmatpush1.bf16.msra.mxu0 0
    %1083 = vmatprep.mubr.bf16.mxu0 0
    %1084 = vmatmul.mubr.bf16.gmra.mrb[0].mxu0 %v977
    %v1085 = vpop.f32.mrb[0].mxu0
    %v1086 = vadd.f32 %v1001, %v1085
    %v1087 = vpop.f32.mrb[0].mxu0
    %v1088 = vpop.f32.mrb[0].mxu0
    %v1089 = vadd.f32 %v1001, %v1088
    %v1090 = vpop.f32.mrb[0].mxu0
    %1091 = vdwg.mxu0
    %v1092 = vadd.f32 %v1086, %v1089
    %v1093 = vrot.slane %v1092, 4
    %v1094 = vadd.f32 %v1092, %v1093
    %v1095 = vrot.slane %v1094, 2
    %v1096 = vadd.f32 %v1094, %v1095
    %v1097 = vrot.slane %v1096, 1
    %v1098 = vadd.f32 %v1096, %v1097
    %v1099 = vrcp.pop 16.0
    %v1100 = vmul.f32 %v1098, %v1099
    %v1101 = vsub.f32 %v1086, %v1100
    %v1102 = vsub.f32 %v1089, %v1100
    %v1103 = vmul.f32 %v1101, %v1101
    %v1104 = vmul.f32 %v1102, %v1102
    %v1105 = vadd.f32 %v1103, %v1104
    %v1106 = vrot.slane %v1105, 4
    %v1107 = vadd.f32 %v1105, %v1106
    %v1108 = vrot.slane %v1107, 2
    %v1109 = vadd.f32 %v1107, %v1108
    %v1110 = vrot.slane %v1109, 1
    %v1111 = vadd.f32 %v1109, %v1110
    %v1112 = vmul.f32 %v1111, %v1099
    %v1113 = vld [vmem:[#allocation10] sm:$0x1]
    %v1115 = vlaneseq
    %v1116 = vshrl.u32 %v1115, 7
    %v1117 = vsub.s32 0, %v1116
    %v1118 = vrot.slane %v1113, %v1117
    %v1120 = vmul.f32 %v1118, %v1101
    %v1121 = vmul.f32 %v1118, %v1102
    %v1122 = vadd.f32 %v1112, 1e-05
    %v1123 = vrsqrt.pop %v1122
    %v1124 = vmul.f32 %v1120, %v1123
    %v1125 = vmul.f32 %v1121, %v1123
    %v1126 = vld [vmem:[#allocation11] sm:$0x1]
    %v1128 = vlaneseq
    %v1129 = vshrl.u32 %v1128, 7
    %v1130 = vsub.s32 0, %v1129
    %v1131 = vrot.slane %v1126, %v1130
    %v1133 = vadd.f32 %v1124, %v1131
    %v1134 = vadd.f32 %v1125, %v1131
    %v1135 = vrot.slane %v1133, 4
    %v1136 = vadd.f32 %v1133, %v1135
    %v1137 = vrot.slane %v1136, 2
    %v1138 = vadd.f32 %v1136, %v1137
    %v1139 = vrot.slane %v1138, 1
    %v1140 = vadd.f32 %v1138, %v1139
    %v1141 = vrot.slane %v1134, 4
    %v1142 = vadd.f32 %v1134, %v1141
    %v1143 = vrot.slane %v1142, 2
    %v1144 = vadd.f32 %v1142, %v1143
    %v1145 = vrot.slane %v1144, 1
    %v1146 = vadd.f32 %v1144, %v1145
    %v1147 = vmul.f32 %v1140, %v244
    %v1148 = vmul.f32 %v1146, %v244
    %v1149 = vpack.c.bf16 %v1147, %v1147
    %v1150 = vpack.c.bf16 %v1148, %v1148
    %v1151 = vld [vmem:[#allocation13] sm:$0xf]
    %v1152 = vld [vmem:[#allocation13 + $0x4] sm:$0xf]
    %v1153 = vld [vmem:[#allocation13 + $0x8] sm:$0xf]
    %v1154 = vld [vmem:[#allocation13 + $0xc] sm:$0xf]
    %v1155 = vld [vmem:[#allocation13 + $0x10] sm:$0xf]
    %v1156 = vld [vmem:[#allocation13 + $0x14] sm:$0xf]
    %v1157 = vld [vmem:[#allocation13 + $0x18] sm:$0xf]
    %v1158 = vld [vmem:[#allocation13 + $0x1c] sm:$0xf]
    %v1159 = vld [vmem:[#allocation13 + $0x20] sm:$0xf]
    %v1160 = vld [vmem:[#allocation13 + $0x24] sm:$0xf]
    %v1161 = vld [vmem:[#allocation13 + $0x28] sm:$0xf]
    %v1162 = vld [vmem:[#allocation13 + $0x2c] sm:$0xf]
    %v1163 = vld [vmem:[#allocation13 + $0x30] sm:$0xf]
    %v1164 = vld [vmem:[#allocation13 + $0x34] sm:$0xf]
    %v1165 = vld [vmem:[#allocation13 + $0x38] sm:$0xf]
    %v1166 = vld [vmem:[#allocation13 + $0x3c] sm:$0xf]
    %v1167 = vld [vmem:[#allocation14] sm:$0x1]
    %v1169 = vlaneseq
    %v1170 = vshrl.u32 %v1169, 7
    %v1171 = vsub.s32 0, %v1170
    %v1172 = vrot.slane %v1167, %v1171
    %v1176 = vunpack.c.l.b16 %v1149
    %v1177 = vunpack.c.l.b16 %v1150
    %v1178 = vsel %vm276, %v1177, %v1176
    %v1179 = vpack.c.b16 %v1178, %v1178
    %v1197 = vunpack.c.l.b16 %v1151
    %v1198 = vunpack.c.l.b16 %v1152
    %v1199 = vunpack.c.l.b16 %v1153
    %v1200 = vunpack.c.l.b16 %v1154
    %v1201 = vunpack.c.l.b16 %v1155
    %v1202 = vunpack.c.l.b16 %v1156
    %v1203 = vunpack.c.l.b16 %v1157
    %v1204 = vunpack.c.l.b16 %v1158
    %v1205 = vunpack.c.l.b16 %v1159
    %v1206 = vunpack.c.l.b16 %v1160
    %v1207 = vunpack.c.l.b16 %v1161
    %v1208 = vunpack.c.l.b16 %v1162
    %v1209 = vunpack.c.l.b16 %v1163
    %v1210 = vunpack.c.l.b16 %v1164
    %v1211 = vunpack.c.l.b16 %v1165
    %v1212 = vunpack.c.l.b16 %v1166
    %v1213 = vpack.c.b16 %v1198, %v1197
    %v1214 = vpack.c.b16 %v1200, %v1199
    %v1215 = vpack.c.b16 %v1202, %v1201
    %v1216 = vpack.c.b16 %v1204, %v1203
    %v1217 = vpack.c.b16 %v1206, %v1205
    %v1218 = vpack.c.b16 %v1208, %v1207
    %v1219 = vpack.c.b16 %v1210, %v1209
    %v1220 = vpack.c.b16 %v1212, %v1211
    %1229 = vmatprep.subr.bf16.mxu0 0
    %1230 = vmatpush1.bf16.msra.mxu0 %v1213
    %1231 = vmatprep.subr.bf16.mxu0 0
    %1232 = vmatpush1.bf16.msra.mxu0 %v1214
    %1233 = vmatprep.subr.bf16.mxu0 0
    %1234 = vmatpush1.bf16.msra.mxu0 %v1215
    %1235 = vmatprep.subr.bf16.mxu0 0
    %1236 = vmatpush1.bf16.msra.mxu0 %v1216
    %1237 = vmatprep.subr.bf16.mxu0 0
    %1238 = vmatpush1.bf16.msra.mxu0 %v1217
    %1239 = vmatprep.subr.bf16.mxu0 0
    %1240 = vmatpush1.bf16.msra.mxu0 %v1218
    %1241 = vmatprep.subr.bf16.mxu0 0
    %1242 = vmatpush1.bf16.msra.mxu0 %v1219
    %1243 = vmatprep.subr.bf16.mxu0 0
    %1244 = vmatpush1.bf16.msra.mxu0 %v1220
    %1245 = vmatprep.subr.bf16.mxu0 0
    %1246 = vmatpush1.bf16.msra.mxu0 0
    %1247 = vmatprep.subr.bf16.mxu0 0
    %1248 = vmatpush1.bf16.msra.mxu0 0
    %1249 = vmatprep.subr.bf16.mxu0 0
    %1250 = vmatpush1.bf16.msra.mxu0 0
    %1251 = vmatprep.subr.bf16.mxu0 0
    %1252 = vmatpush1.bf16.msra.mxu0 0
    %1253 = vmatprep.subr.bf16.mxu0 0
    %1254 = vmatpush1.bf16.msra.mxu0 0
    %1255 = vmatprep.subr.bf16.mxu0 0
    %1256 = vmatpush1.bf16.msra.mxu0 0
    %1257 = vmatprep.subr.bf16.mxu0 0
    %1258 = vmatpush1.bf16.msra.mxu0 0
    %1259 = vmatprep.subr.bf16.mxu0 0
    %1260 = vmatpush1.bf16.msra.mxu0 0
    %1261 = vmatprep.mubr.bf16.mxu0 0
    %1262 = vmatmul.mubr.bf16.gmra.mrb[0].mxu0 %v1179
    %v1263 = vpop.f32.mrb[0].mxu0
    %v1264 = vadd.f32 %v1172, %v1263
    %v1265 = vpop.f32.mrb[0].mxu0
    %v1266 = vpop.f32.mrb[0].mxu0
    %v1267 = vpop.f32.mrb[0].mxu0
    %1268 = vdwg.mxu0
    %v1269 = vmax.f32 %v1264, 0.0
    %v1270 = vpack.c.bf16 %v1269, %v1269
    %v1271 = vld [vmem:[#allocation16] sm:$0xf]
    %v1272 = vld [vmem:[#allocation16 + $0x4] sm:$0xf]
    %v1273 = vld [vmem:[#allocation16 + $0x8] sm:$0xf]
    %v1274 = vld [vmem:[#allocation16 + $0xc] sm:$0xf]
    %v1275 = vld [vmem:[#allocation16 + $0x10] sm:$0xf]
    %v1276 = vld [vmem:[#allocation16 + $0x14] sm:$0xf]
    %v1277 = vld [vmem:[#allocation16 + $0x18] sm:$0xf]
    %v1278 = vld [vmem:[#allocation16 + $0x1c] sm:$0xf]
    %v1279 = vld [vmem:[#allocation16 + $0x20] sm:$0xf]
    %v1280 = vld [vmem:[#allocation16 + $0x24] sm:$0xf]
    %v1281 = vld [vmem:[#allocation16 + $0x28] sm:$0xf]
    %v1282 = vld [vmem:[#allocation16 + $0x2c] sm:$0xf]
    %v1283 = vld [vmem:[#allocation16 + $0x30] sm:$0xf]
    %v1284 = vld [vmem:[#allocation16 + $0x34] sm:$0xf]
    %v1285 = vld [vmem:[#allocation16 + $0x38] sm:$0xf]
    %v1286 = vld [vmem:[#allocation16 + $0x3c] sm:$0xf]
    %v1287 = vld [vmem:[#allocation17] sm:$0x1]
    %v1289 = vlaneseq
    %v1290 = vshrl.u32 %v1289, 7
    %v1291 = vsub.s32 0, %v1290
    %v1292 = vrot.slane %v1287, %v1291
    %v1310 = vunpack.c.l.b16 %v1271
    %v1311 = vunpack.c.l.b16 %v1272
    %v1312 = vunpack.c.l.b16 %v1273
    %v1313 = vunpack.c.l.b16 %v1274
    %v1314 = vunpack.c.l.b16 %v1275
    %v1315 = vunpack.c.l.b16 %v1276
    %v1316 = vunpack.c.l.b16 %v1277
    %v1317 = vunpack.c.l.b16 %v1278
    %v1318 = vunpack.c.l.b16 %v1279
    %v1319 = vunpack.c.l.b16 %v1280
    %v1320 = vunpack.c.l.b16 %v1281
    %v1321 = vunpack.c.l.b16 %v1282
    %v1322 = vunpack.c.l.b16 %v1283
    %v1323 = vunpack.c.l.b16 %v1284
    %v1324 = vunpack.c.l.b16 %v1285
    %v1325 = vunpack.c.l.b16 %v1286
    %v1326 = vpack.c.b16 %v1311, %v1310
    %v1327 = vpack.c.b16 %v1313, %v1312
    %v1328 = vpack.c.b16 %v1315, %v1314
    %v1329 = vpack.c.b16 %v1317, %v1316
    %v1330 = vpack.c.b16 %v1319, %v1318
    %v1331 = vpack.c.b16 %v1321, %v1320
    %v1332 = vpack.c.b16 %v1323, %v1322
    %v1333 = vpack.c.b16 %v1325, %v1324
    %1342 = vmatprep.subr.bf16.mxu0 0
    %1343 = vmatpush1.bf16.msra.mxu0 %v1326
    %1344 = vmatprep.subr.bf16.mxu0 0
    %1345 = vmatpush1.bf16.msra.mxu0 %v1327
    %1346 = vmatprep.subr.bf16.mxu0 0
    %1347 = vmatpush1.bf16.msra.mxu0 %v1328
    %1348 = vmatprep.subr.bf16.mxu0 0
    %1349 = vmatpush1.bf16.msra.mxu0 %v1329
    %1350 = vmatprep.subr.bf16.mxu0 0
    %1351 = vmatpush1.bf16.msra.mxu0 %v1330
    %1352 = vmatprep.subr.bf16.mxu0 0
    %1353 = vmatpush1.bf16.msra.mxu0 %v1331
    %1354 = vmatprep.subr.bf16.mxu0 0
    %1355 = vmatpush1.bf16.msra.mxu0 %v1332
    %1356 = vmatprep.subr.bf16.mxu0 0
    %1357 = vmatpush1.bf16.msra.mxu0 %v1333
    %1358 = vmatprep.subr.bf16.mxu0 0
    %1359 = vmatpush1.bf16.msra.mxu0 0
    %1360 = vmatprep.subr.bf16.mxu0 0
    %1361 = vmatpush1.bf16.msra.mxu0 0
    %1362 = vmatprep.subr.bf16.mxu0 0
    %1363 = vmatpush1.bf16.msra.mxu0 0
    %1364 = vmatprep.subr.bf16.mxu0 0
    %1365 = vmatpush1.bf16.msra.mxu0 0
    %1366 = vmatprep.subr.bf16.mxu0 0
    %1367 = vmatpush1.bf16.msra.mxu0 0
    %1368 = vmatprep.subr.bf16.mxu0 0
    %1369 = vmatpush1.bf16.msra.mxu0 0
    %1370 = vmatprep.subr.bf16.mxu0 0
    %1371 = vmatpush1.bf16.msra.mxu0 0
    %1372 = vmatprep.subr.bf16.mxu0 0
    %1373 = vmatpush1.bf16.msra.mxu0 0
    %1374 = vmatprep.mubr.bf16.mxu0 0
    %1375 = vmatmul.mubr.bf16.gmra.mrb[0].mxu0 %v1270
    %v1376 = vpop.f32.mrb[0].mxu0
    %v1377 = vadd.f32 %v1292, %v1376
    %v1378 = vpop.f32.mrb[0].mxu0
    %v1379 = vpop.f32.mrb[0].mxu0
    %v1380 = vpop.f32.mrb[0].mxu0
    %1381 = vdwg.mxu0
    %1382 = vst [vmem:[#allocation19] sm:$0x3] %v1377
    // Predicated region
    $region106: #{net_forward.1} parent=1 // pred_check
      _
    $region107: #{net_forward.1} parent=1 // pred_check_branch
      %1384 = sbr.rel (0) target = $region109
    $region108: #{net_forward.1} parent=1 // pred_region
      %s1386 = ssub.s32 32, 32
      %1387 = vsyncadd [#allocation4], %s1386
      %s1389 = sshll.u32 [#allocation19], 4
      %s1390 = int_to_ptr.vmem [resolvable:$true] %s1389
      %1392 = dma.vmem_to_hbm [thread:$0]  %s1390, 32, %s16, [#allocation4]
    $region109: #{net_forward.1} parent=1 // pred_fallthru
      _
    // Predicated region
    $region110: #{net_forward.1} parent=1 // pred_check
      _
    $region111: #{net_forward.1} parent=1 // pred_check_branch
      %1394 = sbr.rel (0) target = $region113
    $region112: #{net_forward.1} parent=1 // pred_region
      %1395 = dma.done [#allocation4], 32
    $region113: #{net_forward.1} parent=1 // pred_fallthru
      _
    %1396 = vsyncpa [#allocation3], 1
    %1397 = vsyncpa [#allocation6], 1
    %1398 = vsyncpa [#allocation9], 1
    %1399 = vsyncpa [#allocation12], 1
    %1400 = vsyncpa [#allocation15], 1
    %1401 = vsyncpa [#allocation18], 1
    %1402 = vsyncpa [#allocation4], 1

</llo_original>
